<compile_context>
chip_gen: v7x
topology: tpu7x:2x2x1
jax: 0.10.0
libtpu: 0.0.40
codegen_flags: <defaults>
</compile_context>

<pallas_src>
import functools

import jax
import jax.numpy as jnp
from jax.experimental import pallas as pl
from jax.experimental.pallas import tpu as pltpu


# ---------------------------------------------------------------------------
# Standalone mixprop kernel (single adjacency, single conv head)
# ---------------------------------------------------------------------------
def mixprop_kernel(x_ref, a_ref, w_ref, b_ref, o_ref, ho_ref, *, gdep, alpha):
    # x_ref:  (C, V, L)        per-batch NCHW slab (batch dim squeezed)
    # a_ref:  (V, V)           row-normalized adjacency (normalized in wrapper)
    # w_ref:  (O, (gdep+1)*C)  1x1-conv weight
    # b_ref:  (O, 1)           bias
    # o_ref:  (O, V*L)         lane-dense output slab
    # ho_ref: ((Ctot+1)*V, L)  VMEM scratch holding all hop/channel slabs
    C, V, L = x_ref.shape
    Ctot = (gdep + 1) * C
    mm = ho_ref.dtype                       # MXU operand dtype (bf16 or f32)

    # Loop-invariant operands, cast once.
    a_mm = a_ref[...].astype(mm)            # (V, V)
    w_mm = w_ref[...].astype(mm)            # (O, Ctot)
    b = b_ref[...].astype(jnp.float32)      # (O, 1)

    # ---- mix-hop propagation: per-channel 2D MXU matmuls, f32 alpha-mix ----
    for c in range(C):
        x_c = x_ref[c].astype(jnp.float32)                       # (V, L)
        ho_ref[c * V:(c + 1) * V, :] = x_c.astype(mm)             # hop 0
        h_c = x_c
        for g in range(1, gdep + 1):
            prop = jnp.dot(a_mm, h_c.astype(mm),
                           preferred_element_type=jnp.float32)    # (V, L)
            h_c = alpha * x_c + (1.0 - alpha) * prop              # f32 mix
            r0 = (g * C + c) * V
            ho_ref[r0:r0 + V, :] = h_c.astype(mm)

    # ---- 1x1 conv: one K=Ctot MXU matmul per node, lane-dense output ----
    for v in range(V):
        h_v = ho_ref[pl.ds(v, Ctot, stride=V), :]                 # (Ctot, L)
        o_v = jnp.dot(w_mm, h_v, preferred_element_type=jnp.float32) + b
        o_ref[:, v * L:(v + 1) * L] = o_v.astype(o_ref.dtype)


def _normalize_adj(adj, V):
    a = adj.astype(jnp.float32) + jnp.eye(V, dtype=jnp.float32)
    return a / jnp.sum(a, axis=1, keepdims=True)


def mixprop_pallas(x, adj, weight, bias, gdep, alpha, *, mxu_dtype=jnp.bfloat16):
    """x: (N, C, V, L) NCHW; adj: (V, V); weight: (c_out, (gdep+1)*C); bias: (c_out,)."""
    N, C, V, L = x.shape
    O, Ctot = weight.shape
    assert Ctot == (gdep + 1) * C

    a = _normalize_adj(adj, V)                       # normalized once per call
    w = weight.astype(jnp.float32)
    b = bias.astype(jnp.float32).reshape(O, 1)

    kernel = functools.partial(mixprop_kernel, gdep=int(gdep), alpha=float(alpha))

    out = pl.pallas_call(
        kernel,
        out_shape=jax.ShapeDtypeStruct((N, O, V * L), x.dtype),
        grid=(N,),
        in_specs=[
            pl.BlockSpec((None, C, V, L), lambda n: (n, 0, 0, 0)),   # NCHW slab
            pl.BlockSpec((V, V), lambda n: (0, 0)),
            pl.BlockSpec((O, Ctot), lambda n: (0, 0)),
            pl.BlockSpec((O, 1), lambda n: (0, 0)),
        ],
        out_specs=pl.BlockSpec((None, O, V * L), lambda n: (n, 0, 0)),
        # +V rows of padding keeps the stride=V gather windows trivially in bounds.
        scratch_shapes=[pltpu.VMEM(((Ctot + 1) * V, L), mxu_dtype)],
        compiler_params=pltpu.CompilerParams(
            dimension_semantics=("parallel",),
            vmem_limit_bytes=64 * 1024 * 1024),
    )(x, a, w, b)

    # Free reshape of the lane-dense slab back to NCHW (no HBM relayout).
    return out.reshape(N, O, V, L)


# ---------------------------------------------------------------------------
# Fused DiffPool mixprop kernel: shared hop stack for (a, a^T) and both heads.
#   embed = W_e @ (HO_a + HO_aT) + 2*b_e ;  pool = W_p @ (HO_a + HO_aT) + 2*b_p
# ---------------------------------------------------------------------------
def diffpool_mixprop_kernel(x_ref, a_ref, at_ref, we_ref, be_ref, wp_ref, bp_ref,
                            oe_ref, op_ref, ho_ref, *, gdep, alpha):
    C, V, L = x_ref.shape
    Ctot = (gdep + 1) * C
    mm = ho_ref.dtype

    # Loop-invariant operands, cast once.
    a_mm = a_ref[...].astype(mm)            # rownorm(a + I)
    at_mm = at_ref[...].astype(mm)          # rownorm(a^T + I)
    we_mm = we_ref[...].astype(mm)
    wp_mm = wp_ref[...].astype(mm)
    be2 = 2.0 * be_ref[...].astype(jnp.float32)    # bias applied once per orientation
    bp2 = 2.0 * bp_ref[...].astype(jnp.float32)

    # ---- propagation with a and a^T, summed hop stack (conv is linear) ----
    for c in range(C):
        x_c = x_ref[c].astype(jnp.float32)                        # (V, L)
        ho_ref[c * V:(c + 1) * V, :] = (2.0 * x_c).astype(mm)     # hop 0: x + x
        h_a = x_c
        h_t = x_c
        for g in range(1, gdep + 1):
            pa = jnp.dot(a_mm, h_a.astype(mm), preferred_element_type=jnp.float32)
            pt = jnp.dot(at_mm, h_t.astype(mm), preferred_element_type=jnp.float32)
            h_a = alpha * x_c + (1.0 - alpha) * pa                # f32 mix
            h_t = alpha * x_c + (1.0 - alpha) * pt
            r0 = (g * C + c) * V
            ho_ref[r0:r0 + V, :] = (h_a + h_t).astype(mm)

    # ---- both conv heads share one corner-turn gather per node ----
    for v in range(V):
        h_v = ho_ref[pl.ds(v, Ctot, stride=V), :]                 # (Ctot, L)
        oe = jnp.dot(we_mm, h_v, preferred_element_type=jnp.float32) + be2
        op = jnp.dot(wp_mm, h_v, preferred_element_type=jnp.float32) + bp2
        oe_ref[:, v * L:(v + 1) * L] = oe.astype(oe_ref.dtype)
        op_ref[:, v * L:(v + 1) * L] = op.astype(op_ref.dtype)


def diffpool_pallas(x, a, w_embed, b_embed, w_pool, b_pool, gdep, alpha, *,
                    mxu_dtype=jnp.bfloat16, final_layer=False):
    """DiffPool forward: fused mixprop kernel for embed+pool, plain JAX for the
    (tiny) softmax / pooling matmuls."""
    if final_layer:
        # TODO(synk): the original final_layer branch uses self.residual_channels,
        # which is undefined on DiffPool; not implemented.
        raise NotImplementedError("final_layer=True path is not implemented")

    N, C, V, L = x.shape
    Oe, Ctot = w_embed.shape
    Op, Ctot_p = w_pool.shape
    assert Ctot == (gdep + 1) * C and Ctot_p == Ctot

    an = _normalize_adj(a, V)            # rownorm(a + I)
    atn = _normalize_adj(a.T, V)         # rownorm(a^T + I)  (NOT the transpose of an)
    we = w_embed.astype(jnp.float32)
    be = b_embed.astype(jnp.float32).reshape(Oe, 1)
    wp = w_pool.astype(jnp.float32)
    bp = b_pool.astype(jnp.float32).reshape(Op, 1)

    kernel = functools.partial(diffpool_mixprop_kernel,
                               gdep=int(gdep), alpha=float(alpha))

    embed_f, pool_f = pl.pallas_call(
        kernel,
        out_shape=(jax.ShapeDtypeStruct((N, Oe, V * L), x.dtype),
                   jax.ShapeDtypeStruct((N, Op, V * L), x.dtype)),
        grid=(N,),
        in_specs=[
            pl.BlockSpec((None, C, V, L), lambda n: (n, 0, 0, 0)),
            pl.BlockSpec((V, V), lambda n: (0, 0)),
            pl.BlockSpec((V, V), lambda n: (0, 0)),
            pl.BlockSpec((Oe, Ctot), lambda n: (0, 0)),
            pl.BlockSpec((Oe, 1), lambda n: (0, 0)),
            pl.BlockSpec((Op, Ctot), lambda n: (0, 0)),
            pl.BlockSpec((Op, 1), lambda n: (0, 0)),
        ],
        out_specs=(pl.BlockSpec((None, Oe, V * L), lambda n: (n, 0, 0)),
                   pl.BlockSpec((None, Op, V * L), lambda n: (n, 0, 0))),
        scratch_shapes=[pltpu.VMEM(((Ctot + 1) * V, L), mxu_dtype)],
        compiler_params=pltpu.CompilerParams(
            dimension_semantics=("parallel",),
            vmem_limit_bytes=64 * 1024 * 1024),
    )(x, an, atn, we, be, wp, bp)

    embed = embed_f.reshape(N, Oe, V, L)
    pool = pool_f.reshape(N, Op, V, L)

    z = embed
    s = jax.nn.softmax(pool, axis=2)
    x_new = jnp.matmul(jnp.swapaxes(s, -1, -2), z)
    a_new = s @ a @ s
    return x_new, a_new


# ---------------------------------------------------------------------------
# Plain-JAX references (mirror of the PyTorch forward) for verification
# ---------------------------------------------------------------------------
def mixprop_reference(x, adj, weight, bias, gdep, alpha):
    V = adj.shape[0]
    a = adj + jnp.eye(V, dtype=adj.dtype)
    a = a / a.sum(1, keepdims=True)
    h = x
    out = [h]
    for _ in range(gdep):
        h = alpha * x + (1.0 - alpha) * jnp.einsum('ncwl,vw->ncvl', h, a)
        out.append(h)
    ho = jnp.concatenate(out, axis=1)
    return jnp.einsum('ncvl,oc->novl', ho, weight) + bias[None, :, None, None]


def diffpool_reference(x, a, w_embed, b_embed, w_pool, b_pool, gdep, alpha):
    mp = lambda x_, a_, w_, b_: mixprop_reference(x_, a_, w_, b_, gdep, alpha)
    embed = mp(x, a, w_embed, b_embed) + mp(x, a.T, w_embed, b_embed)
    pool = mp(x, a, w_pool, b_pool) + mp(x, a.T, w_pool, b_pool)
    z = embed
    s = jax.nn.softmax(pool, axis=2)
    x_new = jnp.matmul(jnp.swapaxes(s, -1, -2), z)
    a_new = s @ a @ s
    return x_new, a_new


if __name__ == "__main__":
    # V == L and conv_channels == residual_channels so the DiffPool pooling
    # matmuls (s @ a @ s, s^T @ z) are well-defined, exactly as the torch code
    # implicitly requires.
    N, C, V, L = 2, 4, 16, 16
    gdep, alpha = 2, 0.05
    O_embed = C        # embed1: conv_channels -> conv_channels
    O_pool = C         # pool1:  conv_channels -> residual_channels (= C here)
    Ctot = (gdep + 1) * C

    key = jax.random.PRNGKey(0)
    ks = jax.random.split(key, 6)
    x = jax.random.normal(ks[0], (N, C, V, L), dtype=jnp.float32)
    adj = jax.random.uniform(ks[1], (V, V), dtype=jnp.float32)      # positive rowsums
    we = jax.random.normal(ks[2], (O_embed, Ctot), dtype=jnp.float32) * 0.1
    be = jax.random.normal(ks[3], (O_embed,), dtype=jnp.float32) * 0.1
    wp = jax.random.normal(ks[4], (O_pool, Ctot), dtype=jnp.float32) * 0.1
    bp = jax.random.normal(ks[5], (O_pool,), dtype=jnp.float32) * 0.1

    # 1) standalone mixprop kernel, f32 MXU path (strict check).
    y_ref = mixprop_reference(x, adj, we, be, gdep, alpha)
    y32 = jax.block_until_ready(
        mixprop_pallas(x, adj, we, be, gdep, alpha, mxu_dtype=jnp.float32))
    assert y32.shape == (N, O_embed, V, L)
    assert jnp.allclose(y32, y_ref, rtol=2e-4, atol=2e-4), "f32 mixprop mismatch"

    # 2) standalone mixprop kernel, bf16 MXU operands + f32 accumulation.
    y16 = jax.block_until_ready(
        mixprop_pallas(x, adj, we, be, gdep, alpha, mxu_dtype=jnp.bfloat16))
    assert jnp.allclose(y16, y_ref, rtol=2e-2, atol=2e-2), "bf16 mixprop mismatch"

    # 3) fused DiffPool forward vs plain-JAX reference (f32 strict, then bf16).
    xr, ar = diffpool_reference(x, adj, we, be, wp, bp, gdep, alpha)

    xp32, ap32 = jax.block_until_ready(
        diffpool_pallas(x, adj, we, be, wp, bp, gdep, alpha, mxu_dtype=jnp.float32))
    assert xp32.shape == xr.shape and ap32.shape == ar.shape
    assert jnp.allclose(xp32, xr, rtol=2e-3, atol=2e-3), "f32 DiffPool x_new mismatch"
    assert jnp.allclose(ap32, ar, rtol=2e-3, atol=2e-3), "f32 DiffPool a_new mismatch"

    xp16, ap16 = jax.block_until_ready(
        diffpool_pallas(x, adj, we, be, wp, bp, gdep, alpha, mxu_dtype=jnp.bfloat16))
    assert jnp.allclose(xp16, xr, rtol=5e-2, atol=5e-2), "bf16 DiffPool x_new mismatch"
    assert jnp.allclose(ap16, ar, rtol=5e-2, atol=5e-2), "bf16 DiffPool a_new mismatch"

    print("KERNEL_OK")
</pallas_src>

<mosaic_0001>
module attributes {stable_mosaic.version = 11 : i64} {
  func.func @mixprop_kernel(%arg0: i32, %arg1: memref<1x4x16x16xf32, #tpu.memory_space<vmem>>, %arg2: memref<16x16xf32, #tpu.memory_space<vmem>>, %arg3: memref<4x12xf32, #tpu.memory_space<vmem>>, %arg4: memref<4x1xf32, #tpu.memory_space<vmem>>, %arg5: memref<1x4x256xf32, #tpu.memory_space<vmem>>, %arg6: memref<208x16xf32, #tpu.memory_space<vmem>>) attributes {dimension_semantics = [#tpu.dimension_semantics<parallel>], iteration_bounds = array<i64: 2>, scalar_prefetch = 0 : i64, scratch_operands = 1 : i64, tpu.core_type = #tpu.core_type<tc>, window_params = [{transform_indices = @transform_0, window_bounds = array<i64: 1, 4, 16, 16>}, {pipeline_mode = #tpu.pipeline_mode<synchronous>, transform_indices = @transform_1, window_bounds = array<i64: 16, 16>}, {pipeline_mode = #tpu.pipeline_mode<synchronous>, transform_indices = @transform_2, window_bounds = array<i64: 4, 12>}, {pipeline_mode = #tpu.pipeline_mode<synchronous>, transform_indices = @transform_3, window_bounds = array<i64: 4, 1>}, {transform_indices = @transform_4, window_bounds = array<i64: 1, 4, 256>}]} {
    %c0 = arith.constant 0 : index
    %c0_0 = arith.constant 0 : index
    %0 = vector.load %arg2[%c0, %c0_0] : memref<16x16xf32, #tpu.memory_space<vmem>>, vector<16x16xf32>
    %c0_1 = arith.constant 0 : index
    %c0_2 = arith.constant 0 : index
    %1 = vector.load %arg3[%c0_1, %c0_2] : memref<4x12xf32, #tpu.memory_space<vmem>>, vector<4x12xf32>
    %c0_3 = arith.constant 0 : index
    %c0_4 = arith.constant 0 : index
    %2 = vector.load %arg4[%c0_3, %c0_4] : memref<4x1xf32, #tpu.memory_space<vmem>>, vector<4x1xf32>
    %c0_5 = arith.constant 0 : index
    %c0_6 = arith.constant 0 : index
    %c0_7 = arith.constant 0 : index
    %c0_8 = arith.constant 0 : index
    %3 = vector.load %arg1[%c0_5, %c0_6, %c0_7, %c0_8] : memref<1x4x16x16xf32, #tpu.memory_space<vmem>>, vector<1x1x16x16xf32>
    %4 = vector.shape_cast %3 : vector<1x1x16x16xf32> to vector<16x16xf32>
    %c0_9 = arith.constant 0 : index
    %c0_10 = arith.constant 0 : index
    %5 = vector.load %arg6[%c0_9, %c0_10] : memref<208x16xf32, #tpu.memory_space<vmem>>, vector<16x16xf32>
    tpu.vector_store %arg6[%c0_9, %c0_10], %4 {strides = array<i32>} : memref<208x16xf32, #tpu.memory_space<vmem>>, vector<16x16xf32>,
    %cst = arith.constant dense<0.000000e+00> : vector<16x16xf32>
    %6 = tpu.matmul %0, %4, %cst {dimension_numbers = #tpu.dot_dimension_numbers<[1], [0], [0], [1], [0, 0, 1, 1], [], []>} : vector<16x16xf32>, vector<16x16xf32>, vector<16x16xf32> -> vector<16x16xf32>
    %cst_11 = arith.constant 5.000000e-02 : f32
    %7 = vector.broadcast %cst_11 : f32 to vector<16x16xf32>
    %8 = arith.mulf %7, %4 : vector<16x16xf32>
    %cst_12 = arith.constant 0.949999988 : f32
    %9 = vector.broadcast %cst_12 : f32 to vector<16x16xf32>
    %10 = arith.mulf %9, %6 : vector<16x16xf32>
    %11 = arith.addf %8, %10 : vector<16x16xf32>
    %c64 = arith.constant 64 : index
    %c0_13 = arith.constant 0 : index
    %12 = vector.load %arg6[%c64, %c0_13] : memref<208x16xf32, #tpu.memory_space<vmem>>, vector<16x16xf32>
    tpu.vector_store %arg6[%c64, %c0_13], %11 {strides = array<i32>} : memref<208x16xf32, #tpu.memory_space<vmem>>, vector<16x16xf32>,
    %cst_14 = arith.constant dense<0.000000e+00> : vector<16x16xf32>
    %13 = tpu.matmul %0, %11, %cst_14 {dimension_numbers = #tpu.dot_dimension_numbers<[1], [0], [0], [1], [0, 0, 1, 1], [], []>} : vector<16x16xf32>, vector<16x16xf32>, vector<16x16xf32> -> vector<16x16xf32>
    %cst_15 = arith.constant 5.000000e-02 : f32
    %14 = vector.broadcast %cst_15 : f32 to vector<16x16xf32>
    %15 = arith.mulf %14, %4 : vector<16x16xf32>
    %cst_16 = arith.constant 0.949999988 : f32
    %16 = vector.broadcast %cst_16 : f32 to vector<16x16xf32>
    %17 = arith.mulf %16, %13 : vector<16x16xf32>
    %18 = arith.addf %15, %17 : vector<16x16xf32>
    %c128 = arith.constant 128 : index
    %c0_17 = arith.constant 0 : index
    %19 = vector.load %arg6[%c128, %c0_17] : memref<208x16xf32, #tpu.memory_space<vmem>>, vector<16x16xf32>
    tpu.vector_store %arg6[%c128, %c0_17], %18 {strides = array<i32>} : memref<208x16xf32, #tpu.memory_space<vmem>>, vector<16x16xf32>,
    %c0_18 = arith.constant 0 : index
    %c1 = arith.constant 1 : index
    %c0_19 = arith.constant 0 : index
    %c0_20 = arith.constant 0 : index
    %20 = vector.load %arg1[%c0_18, %c1, %c0_19, %c0_20] : memref<1x4x16x16xf32, #tpu.memory_space<vmem>>, vector<1x1x16x16xf32>
    %21 = vector.shape_cast %20 : vector<1x1x16x16xf32> to vector<16x16xf32>
    %c16 = arith.constant 16 : index
    %c0_21 = arith.constant 0 : index
    %22 = vector.load %arg6[%c16, %c0_21] : memref<208x16xf32, #tpu.memory_space<vmem>>, vector<16x16xf32>
    tpu.vector_store %arg6[%c16, %c0_21], %21 {strides = array<i32>} : memref<208x16xf32, #tpu.memory_space<vmem>>, vector<16x16xf32>,
    %cst_22 = arith.constant dense<0.000000e+00> : vector<16x16xf32>
    %23 = tpu.matmul %0, %21, %cst_22 {dimension_numbers = #tpu.dot_dimension_numbers<[1], [0], [0], [1], [0, 0, 1, 1], [], []>} : vector<16x16xf32>, vector<16x16xf32>, vector<16x16xf32> -> vector<16x16xf32>
    %cst_23 = arith.constant 5.000000e-02 : f32
    %24 = vector.broadcast %cst_23 : f32 to vector<16x16xf32>
    %25 = arith.mulf %24, %21 : vector<16x16xf32>
    %cst_24 = arith.constant 0.949999988 : f32
    %26 = vector.broadcast %cst_24 : f32 to vector<16x16xf32>
    %27 = arith.mulf %26, %23 : vector<16x16xf32>
    %28 = arith.addf %25, %27 : vector<16x16xf32>
    %c80 = arith.constant 80 : index
    %c0_25 = arith.constant 0 : index
    %29 = vector.load %arg6[%c80, %c0_25] : memref<208x16xf32, #tpu.memory_space<vmem>>, vector<16x16xf32>
    tpu.vector_store %arg6[%c80, %c0_25], %28 {strides = array<i32>} : memref<208x16xf32, #tpu.memory_space<vmem>>, vector<16x16xf32>,
    %cst_26 = arith.constant dense<0.000000e+00> : vector<16x16xf32>
    %30 = tpu.matmul %0, %28, %cst_26 {dimension_numbers = #tpu.dot_dimension_numbers<[1], [0], [0], [1], [0, 0, 1, 1], [], []>} : vector<16x16xf32>, vector<16x16xf32>, vector<16x16xf32> -> vector<16x16xf32>
    %cst_27 = arith.constant 5.000000e-02 : f32
    %31 = vector.broadcast %cst_27 : f32 to vector<16x16xf32>
    %32 = arith.mulf %31, %21 : vector<16x16xf32>
    %cst_28 = arith.constant 0.949999988 : f32
    %33 = vector.broadcast %cst_28 : f32 to vector<16x16xf32>
    %34 = arith.mulf %33, %30 : vector<16x16xf32>
    %35 = arith.addf %32, %34 : vector<16x16xf32>
    %c144 = arith.constant 144 : index
    %c0_29 = arith.constant 0 : index
    %36 = vector.load %arg6[%c144, %c0_29] : memref<208x16xf32, #tpu.memory_space<vmem>>, vector<16x16xf32>
    tpu.vector_store %arg6[%c144, %c0_29], %35 {strides = array<i32>} : memref<208x16xf32, #tpu.memory_space<vmem>>, vector<16x16xf32>,
    %c0_30 = arith.constant 0 : index
    %c2 = arith.constant 2 : index
    %c0_31 = arith.constant 0 : index
    %c0_32 = arith.constant 0 : index
    %37 = vector.load %arg1[%c0_30, %c2, %c0_31, %c0_32] : memref<1x4x16x16xf32, #tpu.memory_space<vmem>>, vector<1x1x16x16xf32>
    %38 = vector.shape_cast %37 : vector<1x1x16x16xf32> to vector<16x16xf32>
    %c32 = arith.constant 32 : index
    %c0_33 = arith.constant 0 : index
    %39 = vector.load %arg6[%c32, %c0_33] : memref<208x16xf32, #tpu.memory_space<vmem>>, vector<16x16xf32>
    tpu.vector_store %arg6[%c32, %c0_33], %38 {strides = array<i32>} : memref<208x16xf32, #tpu.memory_space<vmem>>, vector<16x16xf32>,
    %cst_34 = arith.constant dense<0.000000e+00> : vector<16x16xf32>
    %40 = tpu.matmul %0, %38, %cst_34 {dimension_numbers = #tpu.dot_dimension_numbers<[1], [0], [0], [1], [0, 0, 1, 1], [], []>} : vector<16x16xf32>, vector<16x16xf32>, vector<16x16xf32> -> vector<16x16xf32>
    %cst_35 = arith.constant 5.000000e-02 : f32
    %41 = vector.broadcast %cst_35 : f32 to vector<16x16xf32>
    %42 = arith.mulf %41, %38 : vector<16x16xf32>
    %cst_36 = arith.constant 0.949999988 : f32
    %43 = vector.broadcast %cst_36 : f32 to vector<16x16xf32>
    %44 = arith.mulf %43, %40 : vector<16x16xf32>
    %45 = arith.addf %42, %44 : vector<16x16xf32>
    %c96 = arith.constant 96 : index
    %c0_37 = arith.constant 0 : index
    %46 = vector.load %arg6[%c96, %c0_37] : memref<208x16xf32, #tpu.memory_space<vmem>>, vector<16x16xf32>
    tpu.vector_store %arg6[%c96, %c0_37], %45 {strides = array<i32>} : memref<208x16xf32, #tpu.memory_space<vmem>>, vector<16x16xf32>,
    %cst_38 = arith.constant dense<0.000000e+00> : vector<16x16xf32>
    %47 = tpu.matmul %0, %45, %cst_38 {dimension_numbers = #tpu.dot_dimension_numbers<[1], [0], [0], [1], [0, 0, 1, 1], [], []>} : vector<16x16xf32>, vector<16x16xf32>, vector<16x16xf32> -> vector<16x16xf32>
    %cst_39 = arith.constant 5.000000e-02 : f32
    %48 = vector.broadcast %cst_39 : f32 to vector<16x16xf32>
    %49 = arith.mulf %48, %38 : vector<16x16xf32>
    %cst_40 = arith.constant 0.949999988 : f32
    %50 = vector.broadcast %cst_40 : f32 to vector<16x16xf32>
    %51 = arith.mulf %50, %47 : vector<16x16xf32>
    %52 = arith.addf %49, %51 : vector<16x16xf32>
    %c160 = arith.constant 160 : index
    %c0_41 = arith.constant 0 : index
    %53 = vector.load %arg6[%c160, %c0_41] : memref<208x16xf32, #tpu.memory_space<vmem>>, vector<16x16xf32>
    tpu.vector_store %arg6[%c160, %c0_41], %52 {strides = array<i32>} : memref<208x16xf32, #tpu.memory_space<vmem>>, vector<16x16xf32>,
    %c0_42 = arith.constant 0 : index
    %c3 = arith.constant 3 : index
    %c0_43 = arith.constant 0 : index
    %c0_44 = arith.constant 0 : index
    %54 = vector.load %arg1[%c0_42, %c3, %c0_43, %c0_44] : memref<1x4x16x16xf32, #tpu.memory_space<vmem>>, vector<1x1x16x16xf32>
    %55 = vector.shape_cast %54 : vector<1x1x16x16xf32> to vector<16x16xf32>
    %c48 = arith.constant 48 : index
    %c0_45 = arith.constant 0 : index
    %56 = vector.load %arg6[%c48, %c0_45] : memref<208x16xf32, #tpu.memory_space<vmem>>, vector<16x16xf32>
    tpu.vector_store %arg6[%c48, %c0_45], %55 {strides = array<i32>} : memref<208x16xf32, #tpu.memory_space<vmem>>, vector<16x16xf32>,
    %cst_46 = arith.constant dense<0.000000e+00> : vector<16x16xf32>
    %57 = tpu.matmul %0, %55, %cst_46 {dimension_numbers = #tpu.dot_dimension_numbers<[1], [0], [0], [1], [0, 0, 1, 1], [], []>} : vector<16x16xf32>, vector<16x16xf32>, vector<16x16xf32> -> vector<16x16xf32>
    %cst_47 = arith.constant 5.000000e-02 : f32
    %58 = vector.broadcast %cst_47 : f32 to vector<16x16xf32>
    %59 = arith.mulf %58, %55 : vector<16x16xf32>
    %cst_48 = arith.constant 0.949999988 : f32
    %60 = vector.broadcast %cst_48 : f32 to vector<16x16xf32>
    %61 = arith.mulf %60, %57 : vector<16x16xf32>
    %62 = arith.addf %59, %61 : vector<16x16xf32>
    %c112 = arith.constant 112 : index
    %c0_49 = arith.constant 0 : index
    %63 = vector.load %arg6[%c112, %c0_49] : memref<208x16xf32, #tpu.memory_space<vmem>>, vector<16x16xf32>
    tpu.vector_store %arg6[%c112, %c0_49], %62 {strides = array<i32>} : memref<208x16xf32, #tpu.memory_space<vmem>>, vector<16x16xf32>,
    %cst_50 = arith.constant dense<0.000000e+00> : vector<16x16xf32>
    %64 = tpu.matmul %0, %62, %cst_50 {dimension_numbers = #tpu.dot_dimension_numbers<[1], [0], [0], [1], [0, 0, 1, 1], [], []>} : vector<16x16xf32>, vector<16x16xf32>, vector<16x16xf32> -> vector<16x16xf32>
    %cst_51 = arith.constant 5.000000e-02 : f32
    %65 = vector.broadcast %cst_51 : f32 to vector<16x16xf32>
    %66 = arith.mulf %65, %55 : vector<16x16xf32>
    %cst_52 = arith.constant 0.949999988 : f32
    %67 = vector.broadcast %cst_52 : f32 to vector<16x16xf32>
    %68 = arith.mulf %67, %64 : vector<16x16xf32>
    %69 = arith.addf %66, %68 : vector<16x16xf32>
    %c176 = arith.constant 176 : index
    %c0_53 = arith.constant 0 : index
    %70 = vector.load %arg6[%c176, %c0_53] : memref<208x16xf32, #tpu.memory_space<vmem>>, vector<16x16xf32>
    tpu.vector_store %arg6[%c176, %c0_53], %69 {strides = array<i32>} : memref<208x16xf32, #tpu.memory_space<vmem>>, vector<16x16xf32>,
    %c0_54 = arith.constant 0 : index
    %c0_55 = arith.constant 0 : index
    %71 = tpu.strided_load %arg6[%c0_54, %c0_55] {strides = array<i32: 16, 1>} : memref<208x16xf32, #tpu.memory_space<vmem>>, vector<12x16xf32>
    %cst_56 = arith.constant dense<0.000000e+00> : vector<4x16xf32>
    %72 = tpu.matmul %1, %71, %cst_56 {dimension_numbers = #tpu.dot_dimension_numbers<[1], [0], [0], [1], [0, 0, 1, 1], [], []>} : vector<4x12xf32>, vector<12x16xf32>, vector<4x16xf32> -> vector<4x16xf32>
    %73 = vector.broadcast %2 : vector<4x1xf32> to vector<4x16xf32>
    %74 = arith.addf %72, %73 : vector<4x16xf32>
    %c0_57 = arith.constant 0 : index
    %c0_58 = arith.constant 0 : index
    %c0_59 = arith.constant 0 : index
    %75 = vector.load %arg5[%c0_57, %c0_58, %c0_59] : memref<1x4x256xf32, #tpu.memory_space<vmem>>, vector<1x4x16xf32>
    %76 = vector.shape_cast %75 : vector<1x4x16xf32> to vector<4x16xf32>
    %77 = vector.shape_cast %74 : vector<4x16xf32> to vector<1x4x16xf32>
    tpu.vector_store %arg5[%c0_57, %c0_58, %c0_59], %77 {strides = array<i32>} : memref<1x4x256xf32, #tpu.memory_space<vmem>>, vector<1x4x16xf32>,
    %c1_60 = arith.constant 1 : index
    %c0_61 = arith.constant 0 : index
    %78 = tpu.strided_load %arg6[%c1_60, %c0_61] {strides = array<i32: 16, 1>} : memref<208x16xf32, #tpu.memory_space<vmem>>, vector<12x16xf32>
    %cst_62 = arith.constant dense<0.000000e+00> : vector<4x16xf32>
    %79 = tpu.matmul %1, %78, %cst_62 {dimension_numbers = #tpu.dot_dimension_numbers<[1], [0], [0], [1], [0, 0, 1, 1], [], []>} : vector<4x12xf32>, vector<12x16xf32>, vector<4x16xf32> -> vector<4x16xf32>
    %80 = vector.broadcast %2 : vector<4x1xf32> to vector<4x16xf32>
    %81 = arith.addf %79, %80 : vector<4x16xf32>
    %c0_63 = arith.constant 0 : index
    %c0_64 = arith.constant 0 : index
    %c16_65 = arith.constant 16 : index
    %82 = vector.load %arg5[%c0_63, %c0_64, %c16_65] : memref<1x4x256xf32, #tpu.memory_space<vmem>>, vector<1x4x16xf32>
    %83 = vector.shape_cast %82 : vector<1x4x16xf32> to vector<4x16xf32>
    %84 = vector.shape_cast %81 : vector<4x16xf32> to vector<1x4x16xf32>
    tpu.vector_store %arg5[%c0_63, %c0_64, %c16_65], %84 {strides = array<i32>} : memref<1x4x256xf32, #tpu.memory_space<vmem>>, vector<1x4x16xf32>,
    %c2_66 = arith.constant 2 : index
    %c0_67 = arith.constant 0 : index
    %85 = tpu.strided_load %arg6[%c2_66, %c0_67] {strides = array<i32: 16, 1>} : memref<208x16xf32, #tpu.memory_space<vmem>>, vector<12x16xf32>
    %cst_68 = arith.constant dense<0.000000e+00> : vector<4x16xf32>
    %86 = tpu.matmul %1, %85, %cst_68 {dimension_numbers = #tpu.dot_dimension_numbers<[1], [0], [0], [1], [0, 0, 1, 1], [], []>} : vector<4x12xf32>, vector<12x16xf32>, vector<4x16xf32> -> vector<4x16xf32>
    %87 = vector.broadcast %2 : vector<4x1xf32> to vector<4x16xf32>
    %88 = arith.addf %86, %87 : vector<4x16xf32>
    %c0_69 = arith.constant 0 : index
    %c0_70 = arith.constant 0 : index
    %c32_71 = arith.constant 32 : index
    %89 = vector.load %arg5[%c0_69, %c0_70, %c32_71] : memref<1x4x256xf32, #tpu.memory_space<vmem>>, vector<1x4x16xf32>
    %90 = vector.shape_cast %89 : vector<1x4x16xf32> to vector<4x16xf32>
    %91 = vector.shape_cast %88 : vector<4x16xf32> to vector<1x4x16xf32>
    tpu.vector_store %arg5[%c0_69, %c0_70, %c32_71], %91 {strides = array<i32>} : memref<1x4x256xf32, #tpu.memory_space<vmem>>, vector<1x4x16xf32>,
    %c3_72 = arith.constant 3 : index
    %c0_73 = arith.constant 0 : index
    %92 = tpu.strided_load %arg6[%c3_72, %c0_73] {strides = array<i32: 16, 1>} : memref<208x16xf32, #tpu.memory_space<vmem>>, vector<12x16xf32>
    %cst_74 = arith.constant dense<0.000000e+00> : vector<4x16xf32>
    %93 = tpu.matmul %1, %92, %cst_74 {dimension_numbers = #tpu.dot_dimension_numbers<[1], [0], [0], [1], [0, 0, 1, 1], [], []>} : vector<4x12xf32>, vector<12x16xf32>, vector<4x16xf32> -> vector<4x16xf32>
    %94 = vector.broadcast %2 : vector<4x1xf32> to vector<4x16xf32>
    %95 = arith.addf %93, %94 : vector<4x16xf32>
    %c0_75 = arith.constant 0 : index
    %c0_76 = arith.constant 0 : index
    %c48_77 = arith.constant 48 : index
    %96 = vector.load %arg5[%c0_75, %c0_76, %c48_77] : memref<1x4x256xf32, #tpu.memory_space<vmem>>, vector<1x4x16xf32>
    %97 = vector.shape_cast %96 : vector<1x4x16xf32> to vector<4x16xf32>
    %98 = vector.shape_cast %95 : vector<4x16xf32> to vector<1x4x16xf32>
    tpu.vector_store %arg5[%c0_75, %c0_76, %c48_77], %98 {strides = array<i32>} : memref<1x4x256xf32, #tpu.memory_space<vmem>>, vector<1x4x16xf32>,
    %c4 = arith.constant 4 : index
    %c0_78 = arith.constant 0 : index
    %99 = tpu.strided_load %arg6[%c4, %c0_78] {strides = array<i32: 16, 1>} : memref<208x16xf32, #tpu.memory_space<vmem>>, vector<12x16xf32>
    %cst_79 = arith.constant dense<0.000000e+00> : vector<4x16xf32>
    %100 = tpu.matmul %1, %99, %cst_79 {dimension_numbers = #tpu.dot_dimension_numbers<[1], [0], [0], [1], [0, 0, 1, 1], [], []>} : vector<4x12xf32>, vector<12x16xf32>, vector<4x16xf32> -> vector<4x16xf32>
    %101 = vector.broadcast %2 : vector<4x1xf32> to vector<4x16xf32>
    %102 = arith.addf %100, %101 : vector<4x16xf32>
    %c0_80 = arith.constant 0 : index
    %c0_81 = arith.constant 0 : index
    %c64_82 = arith.constant 64 : index
    %103 = vector.load %arg5[%c0_80, %c0_81, %c64_82] : memref<1x4x256xf32, #tpu.memory_space<vmem>>, vector<1x4x16xf32>
    %104 = vector.shape_cast %103 : vector<1x4x16xf32> to vector<4x16xf32>
    %105 = vector.shape_cast %102 : vector<4x16xf32> to vector<1x4x16xf32>
    tpu.vector_store %arg5[%c0_80, %c0_81, %c64_82], %105 {strides = array<i32>} : memref<1x4x256xf32, #tpu.memory_space<vmem>>, vector<1x4x16xf32>,
    %c5 = arith.constant 5 : index
    %c0_83 = arith.constant 0 : index
    %106 = tpu.strided_load %arg6[%c5, %c0_83] {strides = array<i32: 16, 1>} : memref<208x16xf32, #tpu.memory_space<vmem>>, vector<12x16xf32>
    %cst_84 = arith.constant dense<0.000000e+00> : vector<4x16xf32>
    %107 = tpu.matmul %1, %106, %cst_84 {dimension_numbers = #tpu.dot_dimension_numbers<[1], [0], [0], [1], [0, 0, 1, 1], [], []>} : vector<4x12xf32>, vector<12x16xf32>, vector<4x16xf32> -> vector<4x16xf32>
    %108 = vector.broadcast %2 : vector<4x1xf32> to vector<4x16xf32>
    %109 = arith.addf %107, %108 : vector<4x16xf32>
    %c0_85 = arith.constant 0 : index
    %c0_86 = arith.constant 0 : index
    %c80_87 = arith.constant 80 : index
    %110 = vector.load %arg5[%c0_85, %c0_86, %c80_87] : memref<1x4x256xf32, #tpu.memory_space<vmem>>, vector<1x4x16xf32>
    %111 = vector.shape_cast %110 : vector<1x4x16xf32> to vector<4x16xf32>
    %112 = vector.shape_cast %109 : vector<4x16xf32> to vector<1x4x16xf32>
    tpu.vector_store %arg5[%c0_85, %c0_86, %c80_87], %112 {strides = array<i32>} : memref<1x4x256xf32, #tpu.memory_space<vmem>>, vector<1x4x16xf32>,
    %c6 = arith.constant 6 : index
    %c0_88 = arith.constant 0 : index
    %113 = tpu.strided_load %arg6[%c6, %c0_88] {strides = array<i32: 16, 1>} : memref<208x16xf32, #tpu.memory_space<vmem>>, vector<12x16xf32>
    %cst_89 = arith.constant dense<0.000000e+00> : vector<4x16xf32>
    %114 = tpu.matmul %1, %113, %cst_89 {dimension_numbers = #tpu.dot_dimension_numbers<[1], [0], [0], [1], [0, 0, 1, 1], [], []>} : vector<4x12xf32>, vector<12x16xf32>, vector<4x16xf32> -> vector<4x16xf32>
    %115 = vector.broadcast %2 : vector<4x1xf32> to vector<4x16xf32>
    %116 = arith.addf %114, %115 : vector<4x16xf32>
    %c0_90 = arith.constant 0 : index
    %c0_91 = arith.constant 0 : index
    %c96_92 = arith.constant 96 : index
    %117 = vector.load %arg5[%c0_90, %c0_91, %c96_92] : memref<1x4x256xf32, #tpu.memory_space<vmem>>, vector<1x4x16xf32>
    %118 = vector.shape_cast %117 : vector<1x4x16xf32> to vector<4x16xf32>
    %119 = vector.shape_cast %116 : vector<4x16xf32> to vector<1x4x16xf32>
    tpu.vector_store %arg5[%c0_90, %c0_91, %c96_92], %119 {strides = array<i32>} : memref<1x4x256xf32, #tpu.memory_space<vmem>>, vector<1x4x16xf32>,
    %c7 = arith.constant 7 : index
    %c0_93 = arith.constant 0 : index
    %120 = tpu.strided_load %arg6[%c7, %c0_93] {strides = array<i32: 16, 1>} : memref<208x16xf32, #tpu.memory_space<vmem>>, vector<12x16xf32>
    %cst_94 = arith.constant dense<0.000000e+00> : vector<4x16xf32>
    %121 = tpu.matmul %1, %120, %cst_94 {dimension_numbers = #tpu.dot_dimension_numbers<[1], [0], [0], [1], [0, 0, 1, 1], [], []>} : vector<4x12xf32>, vector<12x16xf32>, vector<4x16xf32> -> vector<4x16xf32>
    %122 = vector.broadcast %2 : vector<4x1xf32> to vector<4x16xf32>
    %123 = arith.addf %121, %122 : vector<4x16xf32>
    %c0_95 = arith.constant 0 : index
    %c0_96 = arith.constant 0 : index
    %c112_97 = arith.constant 112 : index
    %124 = vector.load %arg5[%c0_95, %c0_96, %c112_97] : memref<1x4x256xf32, #tpu.memory_space<vmem>>, vector<1x4x16xf32>
    %125 = vector.shape_cast %124 : vector<1x4x16xf32> to vector<4x16xf32>
    %126 = vector.shape_cast %123 : vector<4x16xf32> to vector<1x4x16xf32>
    tpu.vector_store %arg5[%c0_95, %c0_96, %c112_97], %126 {strides = array<i32>} : memref<1x4x256xf32, #tpu.memory_space<vmem>>, vector<1x4x16xf32>,
    %c8 = arith.constant 8 : index
    %c0_98 = arith.constant 0 : index
    %127 = tpu.strided_load %arg6[%c8, %c0_98] {strides = array<i32: 16, 1>} : memref<208x16xf32, #tpu.memory_space<vmem>>, vector<12x16xf32>
    %cst_99 = arith.constant dense<0.000000e+00> : vector<4x16xf32>
    %128 = tpu.matmul %1, %127, %cst_99 {dimension_numbers = #tpu.dot_dimension_numbers<[1], [0], [0], [1], [0, 0, 1, 1], [], []>} : vector<4x12xf32>, vector<12x16xf32>, vector<4x16xf32> -> vector<4x16xf32>
    %129 = vector.broadcast %2 : vector<4x1xf32> to vector<4x16xf32>
    %130 = arith.addf %128, %129 : vector<4x16xf32>
    %c0_100 = arith.constant 0 : index
    %c0_101 = arith.constant 0 : index
    %c128_102 = arith.constant 128 : index
    %131 = vector.load %arg5[%c0_100, %c0_101, %c128_102] : memref<1x4x256xf32, #tpu.memory_space<vmem>>, vector<1x4x16xf32>
    %132 = vector.shape_cast %131 : vector<1x4x16xf32> to vector<4x16xf32>
    %133 = vector.shape_cast %130 : vector<4x16xf32> to vector<1x4x16xf32>
    tpu.vector_store %arg5[%c0_100, %c0_101, %c128_102], %133 {strides = array<i32>} : memref<1x4x256xf32, #tpu.memory_space<vmem>>, vector<1x4x16xf32>,
    %c9 = arith.constant 9 : index
    %c0_103 = arith.constant 0 : index
    %134 = tpu.strided_load %arg6[%c9, %c0_103] {strides = array<i32: 16, 1>} : memref<208x16xf32, #tpu.memory_space<vmem>>, vector<12x16xf32>
    %cst_104 = arith.constant dense<0.000000e+00> : vector<4x16xf32>
    %135 = tpu.matmul %1, %134, %cst_104 {dimension_numbers = #tpu.dot_dimension_numbers<[1], [0], [0], [1], [0, 0, 1, 1], [], []>} : vector<4x12xf32>, vector<12x16xf32>, vector<4x16xf32> -> vector<4x16xf32>
    %136 = vector.broadcast %2 : vector<4x1xf32> to vector<4x16xf32>
    %137 = arith.addf %135, %136 : vector<4x16xf32>
    %c0_105 = arith.constant 0 : index
    %c0_106 = arith.constant 0 : index
    %c144_107 = arith.constant 144 : index
    %138 = vector.load %arg5[%c0_105, %c0_106, %c144_107] : memref<1x4x256xf32, #tpu.memory_space<vmem>>, vector<1x4x16xf32>
    %139 = vector.shape_cast %138 : vector<1x4x16xf32> to vector<4x16xf32>
    %140 = vector.shape_cast %137 : vector<4x16xf32> to vector<1x4x16xf32>
    tpu.vector_store %arg5[%c0_105, %c0_106, %c144_107], %140 {strides = array<i32>} : memref<1x4x256xf32, #tpu.memory_space<vmem>>, vector<1x4x16xf32>,
    %c10 = arith.constant 10 : index
    %c0_108 = arith.constant 0 : index
    %141 = tpu.strided_load %arg6[%c10, %c0_108] {strides = array<i32: 16, 1>} : memref<208x16xf32, #tpu.memory_space<vmem>>, vector<12x16xf32>
    %cst_109 = arith.constant dense<0.000000e+00> : vector<4x16xf32>
    %142 = tpu.matmul %1, %141, %cst_109 {dimension_numbers = #tpu.dot_dimension_numbers<[1], [0], [0], [1], [0, 0, 1, 1], [], []>} : vector<4x12xf32>, vector<12x16xf32>, vector<4x16xf32> -> vector<4x16xf32>
    %143 = vector.broadcast %2 : vector<4x1xf32> to vector<4x16xf32>
    %144 = arith.addf %142, %143 : vector<4x16xf32>
    %c0_110 = arith.constant 0 : index
    %c0_111 = arith.constant 0 : index
    %c160_112 = arith.constant 160 : index
    %145 = vector.load %arg5[%c0_110, %c0_111, %c160_112] : memref<1x4x256xf32, #tpu.memory_space<vmem>>, vector<1x4x16xf32>
    %146 = vector.shape_cast %145 : vector<1x4x16xf32> to vector<4x16xf32>
    %147 = vector.shape_cast %144 : vector<4x16xf32> to vector<1x4x16xf32>
    tpu.vector_store %arg5[%c0_110, %c0_111, %c160_112], %147 {strides = array<i32>} : memref<1x4x256xf32, #tpu.memory_space<vmem>>, vector<1x4x16xf32>,
    %c11 = arith.constant 11 : index
    %c0_113 = arith.constant 0 : index
    %148 = tpu.strided_load %arg6[%c11, %c0_113] {strides = array<i32: 16, 1>} : memref<208x16xf32, #tpu.memory_space<vmem>>, vector<12x16xf32>
    %cst_114 = arith.constant dense<0.000000e+00> : vector<4x16xf32>
    %149 = tpu.matmul %1, %148, %cst_114 {dimension_numbers = #tpu.dot_dimension_numbers<[1], [0], [0], [1], [0, 0, 1, 1], [], []>} : vector<4x12xf32>, vector<12x16xf32>, vector<4x16xf32> -> vector<4x16xf32>
    %150 = vector.broadcast %2 : vector<4x1xf32> to vector<4x16xf32>
    %151 = arith.addf %149, %150 : vector<4x16xf32>
    %c0_115 = arith.constant 0 : index
    %c0_116 = arith.constant 0 : index
    %c176_117 = arith.constant 176 : index
    %152 = vector.load %arg5[%c0_115, %c0_116, %c176_117] : memref<1x4x256xf32, #tpu.memory_space<vmem>>, vector<1x4x16xf32>
    %153 = vector.shape_cast %152 : vector<1x4x16xf32> to vector<4x16xf32>
    %154 = vector.shape_cast %151 : vector<4x16xf32> to vector<1x4x16xf32>
    tpu.vector_store %arg5[%c0_115, %c0_116, %c176_117], %154 {strides = array<i32>} : memref<1x4x256xf32, #tpu.memory_space<vmem>>, vector<1x4x16xf32>,
    %c12 = arith.constant 12 : index
    %c0_118 = arith.constant 0 : index
    %155 = tpu.strided_load %arg6[%c12, %c0_118] {strides = array<i32: 16, 1>} : memref<208x16xf32, #tpu.memory_space<vmem>>, vector<12x16xf32>
    %cst_119 = arith.constant dense<0.000000e+00> : vector<4x16xf32>
    %156 = tpu.matmul %1, %155, %cst_119 {dimension_numbers = #tpu.dot_dimension_numbers<[1], [0], [0], [1], [0, 0, 1, 1], [], []>} : vector<4x12xf32>, vector<12x16xf32>, vector<4x16xf32> -> vector<4x16xf32>
    %157 = vector.broadcast %2 : vector<4x1xf32> to vector<4x16xf32>
    %158 = arith.addf %156, %157 : vector<4x16xf32>
    %c0_120 = arith.constant 0 : index
    %c0_121 = arith.constant 0 : index
    %c192 = arith.constant 192 : index
    %159 = vector.load %arg5[%c0_120, %c0_121, %c192] : memref<1x4x256xf32, #tpu.memory_space<vmem>>, vector<1x4x16xf32>
    %160 = vector.shape_cast %159 : vector<1x4x16xf32> to vector<4x16xf32>
    %161 = vector.shape_cast %158 : vector<4x16xf32> to vector<1x4x16xf32>
    tpu.vector_store %arg5[%c0_120, %c0_121, %c192], %161 {strides = array<i32>} : memref<1x4x256xf32, #tpu.memory_space<vmem>>, vector<1x4x16xf32>,
    %c13 = arith.constant 13 : index
    %c0_122 = arith.constant 0 : index
    %162 = tpu.strided_load %arg6[%c13, %c0_122] {strides = array<i32: 16, 1>} : memref<208x16xf32, #tpu.memory_space<vmem>>, vector<12x16xf32>
    %cst_123 = arith.constant dense<0.000000e+00> : vector<4x16xf32>
    %163 = tpu.matmul %1, %162, %cst_123 {dimension_numbers = #tpu.dot_dimension_numbers<[1], [0], [0], [1], [0, 0, 1, 1], [], []>} : vector<4x12xf32>, vector<12x16xf32>, vector<4x16xf32> -> vector<4x16xf32>
    %164 = vector.broadcast %2 : vector<4x1xf32> to vector<4x16xf32>
    %165 = arith.addf %163, %164 : vector<4x16xf32>
    %c0_124 = arith.constant 0 : index
    %c0_125 = arith.constant 0 : index
    %c208 = arith.constant 208 : index
    %166 = vector.load %arg5[%c0_124, %c0_125, %c208] : memref<1x4x256xf32, #tpu.memory_space<vmem>>, vector<1x4x16xf32>
    %167 = vector.shape_cast %166 : vector<1x4x16xf32> to vector<4x16xf32>
    %168 = vector.shape_cast %165 : vector<4x16xf32> to vector<1x4x16xf32>
    tpu.vector_store %arg5[%c0_124, %c0_125, %c208], %168 {strides = array<i32>} : memref<1x4x256xf32, #tpu.memory_space<vmem>>, vector<1x4x16xf32>,
    %c14 = arith.constant 14 : index
    %c0_126 = arith.constant 0 : index
    %169 = tpu.strided_load %arg6[%c14, %c0_126] {strides = array<i32: 16, 1>} : memref<208x16xf32, #tpu.memory_space<vmem>>, vector<12x16xf32>
    %cst_127 = arith.constant dense<0.000000e+00> : vector<4x16xf32>
    %170 = tpu.matmul %1, %169, %cst_127 {dimension_numbers = #tpu.dot_dimension_numbers<[1], [0], [0], [1], [0, 0, 1, 1], [], []>} : vector<4x12xf32>, vector<12x16xf32>, vector<4x16xf32> -> vector<4x16xf32>
    %171 = vector.broadcast %2 : vector<4x1xf32> to vector<4x16xf32>
    %172 = arith.addf %170, %171 : vector<4x16xf32>
    %c0_128 = arith.constant 0 : index
    %c0_129 = arith.constant 0 : index
    %c224 = arith.constant 224 : index
    %173 = vector.load %arg5[%c0_128, %c0_129, %c224] : memref<1x4x256xf32, #tpu.memory_space<vmem>>, vector<1x4x16xf32>
    %174 = vector.shape_cast %173 : vector<1x4x16xf32> to vector<4x16xf32>
    %175 = vector.shape_cast %172 : vector<4x16xf32> to vector<1x4x16xf32>
    tpu.vector_store %arg5[%c0_128, %c0_129, %c224], %175 {strides = array<i32>} : memref<1x4x256xf32, #tpu.memory_space<vmem>>, vector<1x4x16xf32>,
    %c15 = arith.constant 15 : index
    %c0_130 = arith.constant 0 : index
    %176 = tpu.strided_load %arg6[%c15, %c0_130] {strides = array<i32: 16, 1>} : memref<208x16xf32, #tpu.memory_space<vmem>>, vector<12x16xf32>
    %cst_131 = arith.constant dense<0.000000e+00> : vector<4x16xf32>
    %177 = tpu.matmul %1, %176, %cst_131 {dimension_numbers = #tpu.dot_dimension_numbers<[1], [0], [0], [1], [0, 0, 1, 1], [], []>} : vector<4x12xf32>, vector<12x16xf32>, vector<4x16xf32> -> vector<4x16xf32>
    %178 = vector.broadcast %2 : vector<4x1xf32> to vector<4x16xf32>
    %179 = arith.addf %177, %178 : vector<4x16xf32>
    %c0_132 = arith.constant 0 : index
    %c0_133 = arith.constant 0 : index
    %c240 = arith.constant 240 : index
    %180 = vector.load %arg5[%c0_132, %c0_133, %c240] : memref<1x4x256xf32, #tpu.memory_space<vmem>>, vector<1x4x16xf32>
    %181 = vector.shape_cast %180 : vector<1x4x16xf32> to vector<4x16xf32>
    %182 = vector.shape_cast %179 : vector<4x16xf32> to vector<1x4x16xf32>
    tpu.vector_store %arg5[%c0_132, %c0_133, %c240], %182 {strides = array<i32>} : memref<1x4x256xf32, #tpu.memory_space<vmem>>, vector<1x4x16xf32>,
    return
  }
  func.func @transform_0(%arg0: i32) -> (i32, i32, i32, i32) {
    %c0_i32 = arith.constant 0 : i32
    %c0_i32_0 = arith.constant 0 : i32
    %c0_i32_1 = arith.constant 0 : i32
    %c0_i32_2 = arith.constant 0 : i32
    return %arg0, %c0_i32, %c0_i32_0, %c0_i32_1 : i32, i32, i32, i32
  }
  func.func @transform_1(%arg0: i32) -> (i32, i32) {
    %c0_i32 = arith.constant 0 : i32
    %c0_i32_0 = arith.constant 0 : i32
    %c0_i32_1 = arith.constant 0 : i32
    return %c0_i32, %c0_i32_0 : i32, i32
  }
  func.func @transform_2(%arg0: i32) -> (i32, i32) {
    %c0_i32 = arith.constant 0 : i32
    %c0_i32_0 = arith.constant 0 : i32
    %c0_i32_1 = arith.constant 0 : i32
    return %c0_i32, %c0_i32_0 : i32, i32
  }
  func.func @transform_3(%arg0: i32) -> (i32, i32) {
    %c0_i32 = arith.constant 0 : i32
    %c0_i32_0 = arith.constant 0 : i32
    %c0_i32_1 = arith.constant 0 : i32
    return %c0_i32, %c0_i32_0 : i32, i32
  }
  func.func @transform_4(%arg0: i32) -> (i32, i32, i32) {
    %c0_i32 = arith.constant 0 : i32
    %c0_i32_0 = arith.constant 0 : i32
    %c0_i32_1 = arith.constant 0 : i32
    return %arg0, %c0_i32, %c0_i32_0 : i32, i32, i32
  }
}

</mosaic_0001>

<llo_original>
// kernel: tpu_custom_call.1
$region0: #{tpu_custom_call.1}
  #allocation0 [shape = 'u32[]', space=smem, size = 0x4, offset = 0x4, fixed_abs, tag = 'smem constant byte address 0x4 - core index']
  #allocation1 [shape = 'u32[144,128]{1,0:T(1,128)}', space=vmem, size = 0x12000, scoped, tag = 'internal scratch']
  #allocation2 [shape = 'f32[208,16]{1,0:T(8,128)}', space=vmem, size = 0x1a000, scoped, tag = 'scratch operand']
  %s0 = inlined_call_operand.hbm [shape: f32[2,4,16,16], index: 0, kind: input, shape index: {}]
  %s1 = inlined_call_operand.hbm [shape: f32[16,16], index: 1, kind: input, shape index: {}]
  %s2 = inlined_call_operand.hbm [shape: f32[4,12], index: 2, kind: input, shape index: {}]
  %s3 = inlined_call_operand.hbm [shape: f32[4,1], index: 3, kind: input, shape index: {}]
  %s4 = inlined_call_operand.hbm [shape: f32[2,4,256], index: 4, kind: output, shape index: {}]
  %s5 = sld [smem:[#allocation0]]
  $region65: #{tpu_custom_call.1} parent=0
    _
  %s7 = ssub.s32 1, %s5
  %s8 = scalar_select 0, %s7, %s5
  $region1: #{tpu_custom_call.1} parent=0
    #allocation3 [shape = 'u8[65536]{0}', space=vmem, size = 0x10000, scoped, tag = 'input window, operand 0']
    #allocation4 [shape = 's32[2]{0}', space=sflag, size = 0x8, scoped, tag = 'scoped memory for tpu_custom_call.1']
    #allocation5 [shape = 's32[2]{0}', space=sflag, size = 0x8, scoped, tag = 'scoped memory for tpu_custom_call.1']
    #allocation6 [shape = 'u8[8192]{0}', space=vmem, size = 0x2000, scoped, tag = 'input window, operand 1, single buffered']
    #allocation7 [shape = 's32[1]{0}', space=sflag, size = 0x4, scoped, tag = 'scoped memory for tpu_custom_call.1']
    #allocation8 [shape = 'u8[2048]{0}', space=vmem, size = 0x800, scoped, tag = 'input window, operand 2, single buffered']
    #allocation9 [shape = 'u8[2048]{0}', space=vmem, size = 0x800, scoped, tag = 'input window, operand 3, single buffered']
    #allocation10 [shape = 's32[1]{0}', space=sflag, size = 0x4, scoped, tag = 'scoped memory for tpu_custom_call.1']
    #allocation11 [shape = 'u8[8192]{0}', space=vmem, size = 0x2000, scoped, tag = 'output window, operand 0']
    %9 = vsyncpa [#allocation4], 0
    %s10 = scalar_lea.sflag [#allocation4], 1
    %11 = vsyncpa %s10, 0
    %12 = vsyncpa [#allocation7], 0
    %13 = vsyncpa [#allocation10], 0
    %14 = vsyncpa [#allocation5], 0
    %s15 = scalar_lea.sflag [#allocation5], 1
    %16 = vsyncpa %s15, 0
    loop: start=0, step=1, limit=4
    $region2: #{tpu_custom_call.1} parent=1 // loop_pre_header
      _
    $region3: #{tpu_custom_call.1} parent=1 // loop_header
      %s18 = sphi 0, %s22
      %p19 = scmp.ge.s32.totalorder %s18, 4
      %s28 = sphi 0, %s30
      %s31 = sphi 0, %s28
      %s32 = sphi 0, %s31
      %s48 = sphi 0, %s32
      %s52 = sphi 0, %s52
      %s54 = sphi 0, %s52
      %s55 = sphi 0, %s54
      %s69 = sphi 0, %s55
      %s73 = sphi 0, %s73
      %s75 = sphi 0, %s73
      %s76 = sphi 0, %s75
      %s90 = sphi 0, %s76
      %s94 = sphi 0, %s94
      %s96 = sphi 0, %s94
      %s97 = sphi 0, %s96
      %s111 = sphi 0, %s97
      %s117 = sphi 0, %s119
      %s120 = sphi 0, %s117
      %s121 = sphi 0, %s120
      %s137 = sphi 0, %s121
    $region4: #{tpu_custom_call.1} parent=1 // loop_header_branch
      %21 = sbr.rel (%p19) target = $region8
    $region5: #{tpu_custom_call.1} parent=1 // loop_body
      %s23 = ssub.s32 %s18, 1
      %s24 = ssub.s32 %s18, 2
      %s25 = sadd.s32 %s18, 1
      %s26 = ssub.s32 %s18, %s25
      %p27 = scmp.eq.s32.totalorder %s26, 0
      %s29 = sadd.s32 %s28, 1
      %s30 = scalar_select %p27, %s28, %s29
      %p33 = pneg %p27
      %p34 = scmp.eq.s32.totalorder %s18, 1
      %p35 = por %p33, %p34
      %p36 = scmp.ne.s32.totalorder %s28, %s31
      %p37 = scmp.eq.s32.totalorder %s18, 0
      %p38 = por %p36, %p37
      %p39 = scmp.ne.s32.totalorder %s28, %s31
      %p40 = scmp.eq.s32.totalorder %s23, 1
      %p41 = por %p39, %p40
      %p42 = scmp.ne.s32.totalorder %s31, %s32
      %p43 = scmp.eq.s32.totalorder %s23, 0
      %p44 = por %p42, %p43
      %p45 = scmp.ne.s32.totalorder %s31, %s32
      %p46 = scmp.eq.s32.totalorder %s24, 1
      %p47 = por %p45, %p46
      %p49 = scmp.ne.s32.totalorder %s32, %s48
      %p50 = scmp.eq.s32.totalorder %s24, 0
      %p51 = por %p49, %p50
      %s53 = sadd.s32 %s52, 1
      %p56 = scmp.eq.s32.totalorder %s18, 1
      %p57 = scmp.ne.s32.totalorder %s52, %s54
      %p58 = scmp.eq.s32.totalorder %s18, 0
      %p59 = por %p57, %p58
      %p60 = scmp.ne.s32.totalorder %s52, %s54
      %p61 = scmp.eq.s32.totalorder %s23, 1
      %p62 = por %p60, %p61
      %p63 = scmp.ne.s32.totalorder %s54, %s55
      %p64 = scmp.eq.s32.totalorder %s23, 0
      %p65 = por %p63, %p64
      %p66 = scmp.ne.s32.totalorder %s54, %s55
      %p67 = scmp.eq.s32.totalorder %s24, 1
      %p68 = por %p66, %p67
      %p70 = scmp.ne.s32.totalorder %s55, %s69
      %p71 = scmp.eq.s32.totalorder %s24, 0
      %p72 = por %p70, %p71
      %s74 = sadd.s32 %s73, 1
      %p77 = scmp.eq.s32.totalorder %s18, 1
      %p78 = scmp.ne.s32.totalorder %s73, %s75
      %p79 = scmp.eq.s32.totalorder %s18, 0
      %p80 = por %p78, %p79
      %p81 = scmp.ne.s32.totalorder %s73, %s75
      %p82 = scmp.eq.s32.totalorder %s23, 1
      %p83 = por %p81, %p82
      %p84 = scmp.ne.s32.totalorder %s75, %s76
      %p85 = scmp.eq.s32.totalorder %s23, 0
      %p86 = por %p84, %p85
      %p87 = scmp.ne.s32.totalorder %s75, %s76
      %p88 = scmp.eq.s32.totalorder %s24, 1
      %p89 = por %p87, %p88
      %p91 = scmp.ne.s32.totalorder %s76, %s90
      %p92 = scmp.eq.s32.totalorder %s24, 0
      %p93 = por %p91, %p92
      %s95 = sadd.s32 %s94, 1
      %p98 = scmp.eq.s32.totalorder %s18, 1
      %p99 = scmp.ne.s32.totalorder %s94, %s96
      %p100 = scmp.eq.s32.totalorder %s18, 0
      %p101 = por %p99, %p100
      %p102 = scmp.ne.s32.totalorder %s94, %s96
      %p103 = scmp.eq.s32.totalorder %s23, 1
      %p104 = por %p102, %p103
      %p105 = scmp.ne.s32.totalorder %s96, %s97
      %p106 = scmp.eq.s32.totalorder %s23, 0
      %p107 = por %p105, %p106
      %p108 = scmp.ne.s32.totalorder %s96, %s97
      %p109 = scmp.eq.s32.totalorder %s24, 1
      %p110 = por %p108, %p109
      %p112 = scmp.ne.s32.totalorder %s97, %s111
      %p113 = scmp.eq.s32.totalorder %s24, 0
      %p114 = por %p112, %p113
      %s115 = ssub.s32 %s18, %s25
      %p116 = scmp.eq.s32.totalorder %s115, 0
      %s118 = sadd.s32 %s117, 1
      %s119 = scalar_select %p116, %s117, %s118
      %p122 = pneg %p116
      %p123 = scmp.eq.s32.totalorder %s18, 1
      %p124 = por %p122, %p123
      %p125 = scmp.ne.s32.totalorder %s117, %s120
      %p126 = scmp.eq.s32.totalorder %s18, 0
      %p127 = por %p125, %p126
      %p128 = scmp.ne.s32.totalorder %s117, %s120
      %p129 = scmp.eq.s32.totalorder %s23, 1
      %p130 = por %p128, %p129
      %p131 = scmp.ne.s32.totalorder %s120, %s121
      %p132 = scmp.eq.s32.totalorder %s23, 0
      %p133 = por %p131, %p132
      %p134 = scmp.ne.s32.totalorder %s120, %s121
      %p135 = scmp.eq.s32.totalorder %s24, 1
      %p136 = por %p134, %p135
      %p138 = scmp.ne.s32.totalorder %s121, %s137
      %p139 = scmp.eq.s32.totalorder %s24, 0
      %p140 = por %p138, %p139
      %p141 = scmp.le.s32.totalorder 1, %s18
      %p142 = scmp.lt.s32.totalorder %s18, 3
      %p143 = pnand %p141, %p142
      %p144 = pneg %p143
      // Predicated region
      $region9: #{tpu_custom_call.1} parent=5 // pred_check
        _
      $region10: #{tpu_custom_call.1} parent=5 // pred_check_branch
        %146 = sbr.rel (%p143) target = $region12
      $region11: #{tpu_custom_call.1} parent=5 // pred_region
        %s147 = ssub.s32 %s18, 1
        // Predicated region
        $region13: #{tpu_custom_call.1} parent=11 // pred_check
          %p148 = pneg %p65
        $region14: #{tpu_custom_call.1} parent=11 // pred_check_branch
          %150 = sbr.rel (%p148) target = $region16
        $region15: #{tpu_custom_call.1} parent=11 // pred_region
          %s152 = ssub.s32 256, 256
          %153 = vsyncadd [#allocation7], %s152
          %s154 = sshll.u32 [#allocation6], 4
          %s155 = int_to_ptr.vmem [resolvable:$true] %s154
          %160 = dma.hbm_to_vmem [thread:$0]  %s1, 256, %s155, [#allocation7], 128, 128, 8
        $region16: #{tpu_custom_call.1} parent=11 // pred_fallthru
          _
        // Predicated region
        $region17: #{tpu_custom_call.1} parent=11 // pred_check
          %p161 = pneg %p86
        $region18: #{tpu_custom_call.1} parent=11 // pred_check_branch
          %163 = sbr.rel (%p161) target = $region20
        $region19: #{tpu_custom_call.1} parent=11 // pred_region
          %s165 = ssub.s32 64, 64
          %166 = vsyncadd [#allocation7], %s165
          %s168 = sshll.u32 [#allocation8], 4
          %s169 = int_to_ptr.vmem [resolvable:$true] %s168
          %171 = dma.hbm_to_vmem [thread:$0]  %s2, 64, %s169, [#allocation7]
        $region20: #{tpu_custom_call.1} parent=11 // pred_fallthru
          _
        // Predicated region
        $region21: #{tpu_custom_call.1} parent=11 // pred_check
          %p172 = pneg %p107
        $region22: #{tpu_custom_call.1} parent=11 // pred_check_branch
          %174 = sbr.rel (%p172) target = $region24
        $region23: #{tpu_custom_call.1} parent=11 // pred_region
          %s176 = ssub.s32 64, 64
          %177 = vsyncadd [#allocation10], %s176
          %s179 = sshll.u32 [#allocation9], 4
          %s180 = int_to_ptr.vmem [resolvable:$true] %s179
          %182 = dma.hbm_to_vmem [thread:$0]  %s3, 64, %s180, [#allocation10]
        $region24: #{tpu_custom_call.1} parent=11 // pred_fallthru
          _
      $region12: #{tpu_custom_call.1} parent=5 // pred_fallthru
        _
      %p183 = scmp.lt.s32.totalorder %s18, 2
      // Predicated region
      $region25: #{tpu_custom_call.1} parent=5 // pred_check
        %p184 = pneg %p183
      $region26: #{tpu_custom_call.1} parent=5 // pred_check_branch
        %186 = sbr.rel (%p184) target = $region28
      $region27: #{tpu_custom_call.1} parent=5 // pred_region
        // Predicated region
        $region29: #{tpu_custom_call.1} parent=27 // pred_check
          %p187 = pneg %p38
        $region30: #{tpu_custom_call.1} parent=27 // pred_check_branch
          %189 = sbr.rel (%p187) target = $region32
        $region31: #{tpu_custom_call.1} parent=27 // pred_region
          %s190 = sand.u32 %s28, 1
          %s191 = scalar_lea.sflag [#allocation4], %s190
          %s192 = sand.u32 %s28, 1
          %s193 = smul.addr %s192, 64
          %s194 = scalar_lea.vmem [#allocation3], %s193
          %s196 = ssub.s32 1024, 1024
          %197 = vsyncadd %s191, %s196
          %s198 = smul.addr %s18, 8
          %s199 = smul.addr %s198, 128
          %s200 = scalar_lea.hbm %s0, %s199
          %s201 = sshll.u32 %s194, 4
          %s202 = int_to_ptr.vmem [resolvable:$true] %s201
          %207 = dma.hbm_to_vmem [thread:$0]  %s200, 1024, %s202, %s191, 128, 128, 8
        $region32: #{tpu_custom_call.1} parent=27 // pred_fallthru
          _
      $region28: #{tpu_custom_call.1} parent=5 // pred_fallthru
        _
      %p208 = scmp.le.s32.totalorder 1, %s18
      %p209 = scmp.lt.s32.totalorder %s18, 3
      %p210 = pnand %p208, %p209
      %p211 = pneg %p210
      // Predicated region
      $region33: #{tpu_custom_call.1} parent=5 // pred_check
        _
      $region34: #{tpu_custom_call.1} parent=5 // pred_check_branch
        %213 = sbr.rel (%p210) target = $region36
      $region35: #{tpu_custom_call.1} parent=5 // pred_region
        %s214 = ssub.s32 %s18, 1
        %s215 = sand.u32 %s31, 1
        %s216 = scalar_lea.sflag [#allocation4], %s215
        %s217 = sand.u32 %s31, 1
        %s218 = smul.addr %s217, 64
        %s219 = scalar_lea.vmem [#allocation3], %s218
        // Predicated region
        $region37: #{tpu_custom_call.1} parent=35 // pred_check
          %p220 = pneg %p44
        $region38: #{tpu_custom_call.1} parent=35 // pred_check_branch
          %222 = sbr.rel (%p220) target = $region40
        $region39: #{tpu_custom_call.1} parent=35 // pred_region
          %223 = dma.done %s216, 1024
        $region40: #{tpu_custom_call.1} parent=35 // pred_fallthru
          _
        // Predicated region
        $region41: #{tpu_custom_call.1} parent=35 // pred_check
          %p224 = pneg %p65
        $region42: #{tpu_custom_call.1} parent=35 // pred_check_branch
          %226 = sbr.rel (%p224) target = $region44
        $region43: #{tpu_custom_call.1} parent=35 // pred_region
          %227 = dma.done [#allocation7], 256
        $region44: #{tpu_custom_call.1} parent=35 // pred_fallthru
          _
        // Predicated region
        $region45: #{tpu_custom_call.1} parent=35 // pred_check
          %p228 = pneg %p86
        $region46: #{tpu_custom_call.1} parent=35 // pred_check_branch
          %230 = sbr.rel (%p228) target = $region48
        $region47: #{tpu_custom_call.1} parent=35 // pred_region
          %231 = dma.done [#allocation7], 64
        $region48: #{tpu_custom_call.1} parent=35 // pred_fallthru
          _
        // Predicated region
        $region49: #{tpu_custom_call.1} parent=35 // pred_check
          %p232 = pneg %p107
        $region50: #{tpu_custom_call.1} parent=35 // pred_check_branch
          %234 = sbr.rel (%p232) target = $region52
        $region51: #{tpu_custom_call.1} parent=35 // pred_region
          %235 = dma.done [#allocation10], 64
        $region52: #{tpu_custom_call.1} parent=35 // pred_fallthru
          _
        %s236 = sand.u32 %s31, 1
        %s237 = scalar_lea.sflag [#allocation4], %s236
        %s238 = sand.u32 %s31, 1
        %s239 = smul.addr %s238, 64
        %s240 = scalar_lea.vmem [#allocation3], %s239
        %p241 = pneg %p44
        %p242 = pneg %p41
        %p243 = pneg %p65
        %p244 = pneg %p62
        %p245 = pneg %p86
        %p246 = pneg %p83
        %p247 = pneg %p107
        %p248 = pneg %p104
        %p249 = pneg %p133
        %p250 = pneg %p130
        %s251 = sand.u32 %s120, 1
        %s252 = scalar_lea.sflag [#allocation5], %s251
        %s253 = sand.u32 %s120, 1
        %s254 = smul.addr %s253, 8
        %s255 = scalar_lea.vmem [#allocation11], %s254
        %v256 = vld [vmem:[#allocation6] sm:$0xff]
        %v257 = vld [vmem:[#allocation6 + $0x8] sm:$0xff]
        %v258 = vld [vmem:[#allocation8] sm:$0xf]
        %v259 = vld [vmem:[#allocation9] sm:$0xf]
        %v260 = vld [vmem:[%s219] sm:$0xff]
        %v261 = vld [vmem:[%s219 + $0x8] sm:$0xff]
        %vm262 = vcmask 130048
        %263 = vst.msk [vmem:[#allocation2] sm:$0xff] %vm262, %v260
        %264 = vst.msk [vmem:[#allocation2 + $0x8] sm:$0xff] %vm262, %v261
        %v266 = vsel %vm262, %v256, 0
        %v269 = vsel %vm262, %v257, 0
        %271 = vmatprep.subr.mxu0 0.0
        %272 = vmatpush1.msra.mxu0 %v260
        %273 = vmatprep.subr.mxu0 0.0
        %274 = vmatpush1.msra.mxu0 %v261
        %275 = vmatprep.subr.mxu0 0.0
        %276 = vmatpush1.msra.mxu0 0.0
        %277 = vmatprep.subr.mxu0 0.0
        %278 = vmatpush1.msra.mxu0 0.0
        %279 = vmatprep.subr.mxu0 0.0
        %280 = vmatpush1.msra.mxu0 0.0
        %281 = vmatprep.subr.mxu0 0.0
        %282 = vmatpush1.msra.mxu0 0.0
        %283 = vmatprep.subr.mxu0 0.0
        %284 = vmatpush1.msra.mxu0 0.0
        %285 = vmatprep.subr.mxu0 0.0
        %286 = vmatpush1.msra.mxu0 0.0
        %287 = vmatprep.subr.mxu0 0.0
        %288 = vmatpush1.msra.mxu0 0.0
        %289 = vmatprep.subr.mxu0 0.0
        %290 = vmatpush1.msra.mxu0 0.0
        %291 = vmatprep.subr.mxu0 0.0
        %292 = vmatpush1.msra.mxu0 0.0
        %293 = vmatprep.subr.mxu0 0.0
        %294 = vmatpush1.msra.mxu0 0.0
        %295 = vmatprep.subr.mxu0 0.0
        %296 = vmatpush1.msra.mxu0 0.0
        %297 = vmatprep.subr.mxu0 0.0
        %298 = vmatpush1.msra.mxu0 0.0
        %299 = vmatprep.subr.mxu0 0.0
        %300 = vmatpush1.msra.mxu0 0.0
        %301 = vmatprep.subr.mxu0 0.0
        %302 = vmatpush1.msra.mxu0 0.0
        %303 = vmatprep.subr.mxu0 0.0
        %304 = vmatpush1.msra.mxu0 0.0
        %305 = vmatprep.subr.mxu0 0.0
        %306 = vmatpush1.msra.mxu0 0.0
        %307 = vmatprep.subr.mxu0 0.0
        %308 = vmatpush1.msra.mxu0 0.0
        %309 = vmatprep.subr.mxu0 0.0
        %310 = vmatpush1.msra.mxu0 0.0
        %311 = vmatprep.subr.mxu0 0.0
        %312 = vmatpush1.msra.mxu0 0.0
        %313 = vmatprep.subr.mxu0 0.0
        %314 = vmatpush1.msra.mxu0 0.0
        %315 = vmatprep.subr.mxu0 0.0
        %316 = vmatpush1.msra.mxu0 0.0
        %317 = vmatprep.subr.mxu0 0.0
        %318 = vmatpush1.msra.mxu0 0.0
        %319 = vmatprep.subr.mxu0 0.0
        %320 = vmatpush1.msra.mxu0 0.0
        %321 = vmatprep.subr.mxu0 0.0
        %322 = vmatpush1.msra.mxu0 0.0
        %323 = vmatprep.subr.mxu0 0.0
        %324 = vmatpush1.msra.mxu0 0.0
        %325 = vmatprep.subr.mxu0 0.0
        %326 = vmatpush1.msra.mxu0 0.0
        %327 = vmatprep.subr.mxu0 0.0
        %328 = vmatpush1.msra.mxu0 0.0
        %329 = vmatprep.subr.mxu0 0.0
        %330 = vmatpush1.msra.mxu0 0.0
        %331 = vmatprep.subr.mxu0 0.0
        %332 = vmatpush1.msra.mxu0 0.0
        %333 = vmatprep.subr.mxu0 0.0
        %334 = vmatpush1.msra.mxu0 0.0
        %335 = vmatprep.mubr.f32.mxu0 0.0
        %336 = vmatmul.mubr.f32.gmra.mrb[0].mxu0 %v266
        %v337 = vpop.f32.mrb[0].mxu0
        %v338 = vadd.f32 0.0, %v337
        %v339 = vpop.f32.mrb[0].mxu0
        %340 = vmatprep.mubr.f32.mxu0 0.0
        %341 = vmatmul.mubr.f32.gmra.mrb[0].mxu0 %v269
        %v342 = vpop.f32.mrb[0].mxu0
        %v343 = vadd.f32 0.0, %v342
        %v344 = vpop.f32.mrb[0].mxu0
        %345 = vdwg.mxu0
        %v346 = vmul.f32 %v260, 0.05
        %v347 = vmul.f32 %v261, 0.05
        %v348 = vmul.f32 %v338, 0.95
        %v349 = vmul.f32 %v343, 0.95
        %v350 = vadd.f32 %v346, %v348
        %v351 = vadd.f32 %v347, %v349
        %352 = vst.msk [vmem:[#allocation2 + $0x40] sm:$0xff] %vm262, %v350
        %353 = vst.msk [vmem:[#allocation2 + $0x48] sm:$0xff] %vm262, %v351
        %354 = vmatprep.subr.mxu0 0.0
        %355 = vmatpush1.msra.mxu0 %v350
        %356 = vmatprep.subr.mxu0 0.0
        %357 = vmatpush1.msra.mxu0 %v351
        %358 = vmatprep.subr.mxu0 0.0
        %359 = vmatpush1.msra.mxu0 0.0
        %360 = vmatprep.subr.mxu0 0.0
        %361 = vmatpush1.msra.mxu0 0.0
        %362 = vmatprep.subr.mxu0 0.0
        %363 = vmatpush1.msra.mxu0 0.0
        %364 = vmatprep.subr.mxu0 0.0
        %365 = vmatpush1.msra.mxu0 0.0
        %366 = vmatprep.subr.mxu0 0.0
        %367 = vmatpush1.msra.mxu0 0.0
        %368 = vmatprep.subr.mxu0 0.0
        %369 = vmatpush1.msra.mxu0 0.0
        %370 = vmatprep.subr.mxu0 0.0
        %371 = vmatpush1.msra.mxu0 0.0
        %372 = vmatprep.subr.mxu0 0.0
        %373 = vmatpush1.msra.mxu0 0.0
        %374 = vmatprep.subr.mxu0 0.0
        %375 = vmatpush1.msra.mxu0 0.0
        %376 = vmatprep.subr.mxu0 0.0
        %377 = vmatpush1.msra.mxu0 0.0
        %378 = vmatprep.subr.mxu0 0.0
        %379 = vmatpush1.msra.mxu0 0.0
        %380 = vmatprep.subr.mxu0 0.0
        %381 = vmatpush1.msra.mxu0 0.0
        %382 = vmatprep.subr.mxu0 0.0
        %383 = vmatpush1.msra.mxu0 0.0
        %384 = vmatprep.subr.mxu0 0.0
        %385 = vmatpush1.msra.mxu0 0.0
        %386 = vmatprep.subr.mxu0 0.0
        %387 = vmatpush1.msra.mxu0 0.0
        %388 = vmatprep.subr.mxu0 0.0
        %389 = vmatpush1.msra.mxu0 0.0
        %390 = vmatprep.subr.mxu0 0.0
        %391 = vmatpush1.msra.mxu0 0.0
        %392 = vmatprep.subr.mxu0 0.0
        %393 = vmatpush1.msra.mxu0 0.0
        %394 = vmatprep.subr.mxu0 0.0
        %395 = vmatpush1.msra.mxu0 0.0
        %396 = vmatprep.subr.mxu0 0.0
        %397 = vmatpush1.msra.mxu0 0.0
        %398 = vmatprep.subr.mxu0 0.0
        %399 = vmatpush1.msra.mxu0 0.0
        %400 = vmatprep.subr.mxu0 0.0
        %401 = vmatpush1.msra.mxu0 0.0
        %402 = vmatprep.subr.mxu0 0.0
        %403 = vmatpush1.msra.mxu0 0.0
        %404 = vmatprep.subr.mxu0 0.0
        %405 = vmatpush1.msra.mxu0 0.0
        %406 = vmatprep.subr.mxu0 0.0
        %407 = vmatpush1.msra.mxu0 0.0
        %408 = vmatprep.subr.mxu0 0.0
        %409 = vmatpush1.msra.mxu0 0.0
        %410 = vmatprep.subr.mxu0 0.0
        %411 = vmatpush1.msra.mxu0 0.0
        %412 = vmatprep.subr.mxu0 0.0
        %413 = vmatpush1.msra.mxu0 0.0
        %414 = vmatprep.subr.mxu0 0.0
        %415 = vmatpush1.msra.mxu0 0.0
        %416 = vmatprep.subr.mxu0 0.0
        %417 = vmatpush1.msra.mxu0 0.0
        %418 = vmatprep.mubr.f32.mxu0 0.0
        %419 = vmatmul.mubr.f32.gmra.mrb[0].mxu0 %v266
        %v420 = vpop.f32.mrb[0].mxu0
        %v421 = vadd.f32 0.0, %v420
        %v422 = vpop.f32.mrb[0].mxu0
        %423 = vmatprep.mubr.f32.mxu0 0.0
        %424 = vmatmul.mubr.f32.gmra.mrb[0].mxu0 %v269
        %v425 = vpop.f32.mrb[0].mxu0
        %v426 = vadd.f32 0.0, %v425
        %v427 = vpop.f32.mrb[0].mxu0
        %428 = vdwg.mxu0
        %v429 = vmul.f32 %v421, 0.95
        %v430 = vmul.f32 %v426, 0.95
        %v431 = vadd.f32 %v346, %v429
        %v432 = vadd.f32 %v347, %v430
        %433 = vst.msk [vmem:[#allocation2 + $0x80] sm:$0xff] %vm262, %v431
        %434 = vst.msk [vmem:[#allocation2 + $0x88] sm:$0xff] %vm262, %v432
        %s435 = scalar_lea.vmem %s219, 16 [#allocation3]
        %v436 = vld [vmem:[%s435] sm:$0xff]
        %v437 = vld [vmem:[%s435 + $0x8] sm:$0xff]
        %438 = vst.msk [vmem:[#allocation2 + $0x10] sm:$0xff] %vm262, %v436
        %439 = vst.msk [vmem:[#allocation2 + $0x18] sm:$0xff] %vm262, %v437
        %440 = vmatprep.subr.mxu0 0.0
        %441 = vmatpush1.msra.mxu0 %v436
        %442 = vmatprep.subr.mxu0 0.0
        %443 = vmatpush1.msra.mxu0 %v437
        %444 = vmatprep.subr.mxu0 0.0
        %445 = vmatpush1.msra.mxu0 0.0
        %446 = vmatprep.subr.mxu0 0.0
        %447 = vmatpush1.msra.mxu0 0.0
        %448 = vmatprep.subr.mxu0 0.0
        %449 = vmatpush1.msra.mxu0 0.0
        %450 = vmatprep.subr.mxu0 0.0
        %451 = vmatpush1.msra.mxu0 0.0
        %452 = vmatprep.subr.mxu0 0.0
        %453 = vmatpush1.msra.mxu0 0.0
        %454 = vmatprep.subr.mxu0 0.0
        %455 = vmatpush1.msra.mxu0 0.0
        %456 = vmatprep.subr.mxu0 0.0
        %457 = vmatpush1.msra.mxu0 0.0
        %458 = vmatprep.subr.mxu0 0.0
        %459 = vmatpush1.msra.mxu0 0.0
        %460 = vmatprep.subr.mxu0 0.0
        %461 = vmatpush1.msra.mxu0 0.0
        %462 = vmatprep.subr.mxu0 0.0
        %463 = vmatpush1.msra.mxu0 0.0
        %464 = vmatprep.subr.mxu0 0.0
        %465 = vmatpush1.msra.mxu0 0.0
        %466 = vmatprep.subr.mxu0 0.0
        %467 = vmatpush1.msra.mxu0 0.0
        %468 = vmatprep.subr.mxu0 0.0
        %469 = vmatpush1.msra.mxu0 0.0
        %470 = vmatprep.subr.mxu0 0.0
        %471 = vmatpush1.msra.mxu0 0.0
        %472 = vmatprep.subr.mxu0 0.0
        %473 = vmatpush1.msra.mxu0 0.0
        %474 = vmatprep.subr.mxu0 0.0
        %475 = vmatpush1.msra.mxu0 0.0
        %476 = vmatprep.subr.mxu0 0.0
        %477 = vmatpush1.msra.mxu0 0.0
        %478 = vmatprep.subr.mxu0 0.0
        %479 = vmatpush1.msra.mxu0 0.0
        %480 = vmatprep.subr.mxu0 0.0
        %481 = vmatpush1.msra.mxu0 0.0
        %482 = vmatprep.subr.mxu0 0.0
        %483 = vmatpush1.msra.mxu0 0.0
        %484 = vmatprep.subr.mxu0 0.0
        %485 = vmatpush1.msra.mxu0 0.0
        %486 = vmatprep.subr.mxu0 0.0
        %487 = vmatpush1.msra.mxu0 0.0
        %488 = vmatprep.subr.mxu0 0.0
        %489 = vmatpush1.msra.mxu0 0.0
        %490 = vmatprep.subr.mxu0 0.0
        %491 = vmatpush1.msra.mxu0 0.0
        %492 = vmatprep.subr.mxu0 0.0
        %493 = vmatpush1.msra.mxu0 0.0
        %494 = vmatprep.subr.mxu0 0.0
        %495 = vmatpush1.msra.mxu0 0.0
        %496 = vmatprep.subr.mxu0 0.0
        %497 = vmatpush1.msra.mxu0 0.0
        %498 = vmatprep.subr.mxu0 0.0
        %499 = vmatpush1.msra.mxu0 0.0
        %500 = vmatprep.subr.mxu0 0.0
        %501 = vmatpush1.msra.mxu0 0.0
        %502 = vmatprep.subr.mxu0 0.0
        %503 = vmatpush1.msra.mxu0 0.0
        %504 = vmatprep.mubr.f32.mxu0 0.0
        %505 = vmatmul.mubr.f32.gmra.mrb[0].mxu0 %v266
        %v506 = vpop.f32.mrb[0].mxu0
        %v507 = vadd.f32 0.0, %v506
        %v508 = vpop.f32.mrb[0].mxu0
        %509 = vmatprep.mubr.f32.mxu0 0.0
        %510 = vmatmul.mubr.f32.gmra.mrb[0].mxu0 %v269
        %v511 = vpop.f32.mrb[0].mxu0
        %v512 = vadd.f32 0.0, %v511
        %v513 = vpop.f32.mrb[0].mxu0
        %514 = vdwg.mxu0
        %v515 = vmul.f32 %v436, 0.05
        %v516 = vmul.f32 %v437, 0.05
        %v517 = vmul.f32 %v507, 0.95
        %v518 = vmul.f32 %v512, 0.95
        %v519 = vadd.f32 %v515, %v517
        %v520 = vadd.f32 %v516, %v518
        %521 = vst.msk [vmem:[#allocation2 + $0x50] sm:$0xff] %vm262, %v519
        %522 = vst.msk [vmem:[#allocation2 + $0x58] sm:$0xff] %vm262, %v520
        %523 = vmatprep.subr.mxu0 0.0
        %524 = vmatpush1.msra.mxu0 %v519
        %525 = vmatprep.subr.mxu0 0.0
        %526 = vmatpush1.msra.mxu0 %v520
        %527 = vmatprep.subr.mxu0 0.0
        %528 = vmatpush1.msra.mxu0 0.0
        %529 = vmatprep.subr.mxu0 0.0
        %530 = vmatpush1.msra.mxu0 0.0
        %531 = vmatprep.subr.mxu0 0.0
        %532 = vmatpush1.msra.mxu0 0.0
        %533 = vmatprep.subr.mxu0 0.0
        %534 = vmatpush1.msra.mxu0 0.0
        %535 = vmatprep.subr.mxu0 0.0
        %536 = vmatpush1.msra.mxu0 0.0
        %537 = vmatprep.subr.mxu0 0.0
        %538 = vmatpush1.msra.mxu0 0.0
        %539 = vmatprep.subr.mxu0 0.0
        %540 = vmatpush1.msra.mxu0 0.0
        %541 = vmatprep.subr.mxu0 0.0
        %542 = vmatpush1.msra.mxu0 0.0
        %543 = vmatprep.subr.mxu0 0.0
        %544 = vmatpush1.msra.mxu0 0.0
        %545 = vmatprep.subr.mxu0 0.0
        %546 = vmatpush1.msra.mxu0 0.0
        %547 = vmatprep.subr.mxu0 0.0
        %548 = vmatpush1.msra.mxu0 0.0
        %549 = vmatprep.subr.mxu0 0.0
        %550 = vmatpush1.msra.mxu0 0.0
        %551 = vmatprep.subr.mxu0 0.0
        %552 = vmatpush1.msra.mxu0 0.0
        %553 = vmatprep.subr.mxu0 0.0
        %554 = vmatpush1.msra.mxu0 0.0
        %555 = vmatprep.subr.mxu0 0.0
        %556 = vmatpush1.msra.mxu0 0.0
        %557 = vmatprep.subr.mxu0 0.0
        %558 = vmatpush1.msra.mxu0 0.0
        %559 = vmatprep.subr.mxu0 0.0
        %560 = vmatpush1.msra.mxu0 0.0
        %561 = vmatprep.subr.mxu0 0.0
        %562 = vmatpush1.msra.mxu0 0.0
        %563 = vmatprep.subr.mxu0 0.0
        %564 = vmatpush1.msra.mxu0 0.0
        %565 = vmatprep.subr.mxu0 0.0
        %566 = vmatpush1.msra.mxu0 0.0
        %567 = vmatprep.subr.mxu0 0.0
        %568 = vmatpush1.msra.mxu0 0.0
        %569 = vmatprep.subr.mxu0 0.0
        %570 = vmatpush1.msra.mxu0 0.0
        %571 = vmatprep.subr.mxu0 0.0
        %572 = vmatpush1.msra.mxu0 0.0
        %573 = vmatprep.subr.mxu0 0.0
        %574 = vmatpush1.msra.mxu0 0.0
        %575 = vmatprep.subr.mxu0 0.0
        %576 = vmatpush1.msra.mxu0 0.0
        %577 = vmatprep.subr.mxu0 0.0
        %578 = vmatpush1.msra.mxu0 0.0
        %579 = vmatprep.subr.mxu0 0.0
        %580 = vmatpush1.msra.mxu0 0.0
        %581 = vmatprep.subr.mxu0 0.0
        %582 = vmatpush1.msra.mxu0 0.0
        %583 = vmatprep.subr.mxu0 0.0
        %584 = vmatpush1.msra.mxu0 0.0
        %585 = vmatprep.subr.mxu0 0.0
        %586 = vmatpush1.msra.mxu0 0.0
        %587 = vmatprep.mubr.f32.mxu0 0.0
        %588 = vmatmul.mubr.f32.gmra.mrb[0].mxu0 %v266
        %v589 = vpop.f32.mrb[0].mxu0
        %v590 = vadd.f32 0.0, %v589
        %v591 = vpop.f32.mrb[0].mxu0
        %592 = vmatprep.mubr.f32.mxu0 0.0
        %593 = vmatmul.mubr.f32.gmra.mrb[0].mxu0 %v269
        %v594 = vpop.f32.mrb[0].mxu0
        %v595 = vadd.f32 0.0, %v594
        %v596 = vpop.f32.mrb[0].mxu0
        %597 = vdwg.mxu0
        %v598 = vmul.f32 %v590, 0.95
        %v599 = vmul.f32 %v595, 0.95
        %v600 = vadd.f32 %v515, %v598
        %v601 = vadd.f32 %v516, %v599
        %602 = vst.msk [vmem:[#allocation2 + $0x90] sm:$0xff] %vm262, %v600
        %603 = vst.msk [vmem:[#allocation2 + $0x98] sm:$0xff] %vm262, %v601
        %s604 = scalar_lea.vmem %s219, 32 [#allocation3]
        %v605 = vld [vmem:[%s604] sm:$0xff]
        %v606 = vld [vmem:[%s604 + $0x8] sm:$0xff]
        %607 = vst.msk [vmem:[#allocation2 + $0x20] sm:$0xff] %vm262, %v605
        %608 = vst.msk [vmem:[#allocation2 + $0x28] sm:$0xff] %vm262, %v606
        %609 = vmatprep.subr.mxu0 0.0
        %610 = vmatpush1.msra.mxu0 %v605
        %611 = vmatprep.subr.mxu0 0.0
        %612 = vmatpush1.msra.mxu0 %v606
        %613 = vmatprep.subr.mxu0 0.0
        %614 = vmatpush1.msra.mxu0 0.0
        %615 = vmatprep.subr.mxu0 0.0
        %616 = vmatpush1.msra.mxu0 0.0
        %617 = vmatprep.subr.mxu0 0.0
        %618 = vmatpush1.msra.mxu0 0.0
        %619 = vmatprep.subr.mxu0 0.0
        %620 = vmatpush1.msra.mxu0 0.0
        %621 = vmatprep.subr.mxu0 0.0
        %622 = vmatpush1.msra.mxu0 0.0
        %623 = vmatprep.subr.mxu0 0.0
        %624 = vmatpush1.msra.mxu0 0.0
        %625 = vmatprep.subr.mxu0 0.0
        %626 = vmatpush1.msra.mxu0 0.0
        %627 = vmatprep.subr.mxu0 0.0
        %628 = vmatpush1.msra.mxu0 0.0
        %629 = vmatprep.subr.mxu0 0.0
        %630 = vmatpush1.msra.mxu0 0.0
        %631 = vmatprep.subr.mxu0 0.0
        %632 = vmatpush1.msra.mxu0 0.0
        %633 = vmatprep.subr.mxu0 0.0
        %634 = vmatpush1.msra.mxu0 0.0
        %635 = vmatprep.subr.mxu0 0.0
        %636 = vmatpush1.msra.mxu0 0.0
        %637 = vmatprep.subr.mxu0 0.0
        %638 = vmatpush1.msra.mxu0 0.0
        %639 = vmatprep.subr.mxu0 0.0
        %640 = vmatpush1.msra.mxu0 0.0
        %641 = vmatprep.subr.mxu0 0.0
        %642 = vmatpush1.msra.mxu0 0.0
        %643 = vmatprep.subr.mxu0 0.0
        %644 = vmatpush1.msra.mxu0 0.0
        %645 = vmatprep.subr.mxu0 0.0
        %646 = vmatpush1.msra.mxu0 0.0
        %647 = vmatprep.subr.mxu0 0.0
        %648 = vmatpush1.msra.mxu0 0.0
        %649 = vmatprep.subr.mxu0 0.0
        %650 = vmatpush1.msra.mxu0 0.0
        %651 = vmatprep.subr.mxu0 0.0
        %652 = vmatpush1.msra.mxu0 0.0
        %653 = vmatprep.subr.mxu0 0.0
        %654 = vmatpush1.msra.mxu0 0.0
        %655 = vmatprep.subr.mxu0 0.0
        %656 = vmatpush1.msra.mxu0 0.0
        %657 = vmatprep.subr.mxu0 0.0
        %658 = vmatpush1.msra.mxu0 0.0
        %659 = vmatprep.subr.mxu0 0.0
        %660 = vmatpush1.msra.mxu0 0.0
        %661 = vmatprep.subr.mxu0 0.0
        %662 = vmatpush1.msra.mxu0 0.0
        %663 = vmatprep.subr.mxu0 0.0
        %664 = vmatpush1.msra.mxu0 0.0
        %665 = vmatprep.subr.mxu0 0.0
        %666 = vmatpush1.msra.mxu0 0.0
        %667 = vmatprep.subr.mxu0 0.0
        %668 = vmatpush1.msra.mxu0 0.0
        %669 = vmatprep.subr.mxu0 0.0
        %670 = vmatpush1.msra.mxu0 0.0
        %671 = vmatprep.subr.mxu0 0.0
        %672 = vmatpush1.msra.mxu0 0.0
        %673 = vmatprep.mubr.f32.mxu0 0.0
        %674 = vmatmul.mubr.f32.gmra.mrb[0].mxu0 %v266
        %v675 = vpop.f32.mrb[0].mxu0
        %v676 = vadd.f32 0.0, %v675
        %v677 = vpop.f32.mrb[0].mxu0
        %678 = vmatprep.mubr.f32.mxu0 0.0
        %679 = vmatmul.mubr.f32.gmra.mrb[0].mxu0 %v269
        %v680 = vpop.f32.mrb[0].mxu0
        %v681 = vadd.f32 0.0, %v680
        %v682 = vpop.f32.mrb[0].mxu0
        %683 = vdwg.mxu0
        %v684 = vmul.f32 %v605, 0.05
        %v685 = vmul.f32 %v606, 0.05
        %v686 = vmul.f32 %v676, 0.95
        %v687 = vmul.f32 %v681, 0.95
        %v688 = vadd.f32 %v684, %v686
        %v689 = vadd.f32 %v685, %v687
        %690 = vst.msk [vmem:[#allocation2 + $0x60] sm:$0xff] %vm262, %v688
        %691 = vst.msk [vmem:[#allocation2 + $0x68] sm:$0xff] %vm262, %v689
        %692 = vmatprep.subr.mxu0 0.0
        %693 = vmatpush1.msra.mxu0 %v688
        %694 = vmatprep.subr.mxu0 0.0
        %695 = vmatpush1.msra.mxu0 %v689
        %696 = vmatprep.subr.mxu0 0.0
        %697 = vmatpush1.msra.mxu0 0.0
        %698 = vmatprep.subr.mxu0 0.0
        %699 = vmatpush1.msra.mxu0 0.0
        %700 = vmatprep.subr.mxu0 0.0
        %701 = vmatpush1.msra.mxu0 0.0
        %702 = vmatprep.subr.mxu0 0.0
        %703 = vmatpush1.msra.mxu0 0.0
        %704 = vmatprep.subr.mxu0 0.0
        %705 = vmatpush1.msra.mxu0 0.0
        %706 = vmatprep.subr.mxu0 0.0
        %707 = vmatpush1.msra.mxu0 0.0
        %708 = vmatprep.subr.mxu0 0.0
        %709 = vmatpush1.msra.mxu0 0.0
        %710 = vmatprep.subr.mxu0 0.0
        %711 = vmatpush1.msra.mxu0 0.0
        %712 = vmatprep.subr.mxu0 0.0
        %713 = vmatpush1.msra.mxu0 0.0
        %714 = vmatprep.subr.mxu0 0.0
        %715 = vmatpush1.msra.mxu0 0.0
        %716 = vmatprep.subr.mxu0 0.0
        %717 = vmatpush1.msra.mxu0 0.0
        %718 = vmatprep.subr.mxu0 0.0
        %719 = vmatpush1.msra.mxu0 0.0
        %720 = vmatprep.subr.mxu0 0.0
        %721 = vmatpush1.msra.mxu0 0.0
        %722 = vmatprep.subr.mxu0 0.0
        %723 = vmatpush1.msra.mxu0 0.0
        %724 = vmatprep.subr.mxu0 0.0
        %725 = vmatpush1.msra.mxu0 0.0
        %726 = vmatprep.subr.mxu0 0.0
        %727 = vmatpush1.msra.mxu0 0.0
        %728 = vmatprep.subr.mxu0 0.0
        %729 = vmatpush1.msra.mxu0 0.0
        %730 = vmatprep.subr.mxu0 0.0
        %731 = vmatpush1.msra.mxu0 0.0
        %732 = vmatprep.subr.mxu0 0.0
        %733 = vmatpush1.msra.mxu0 0.0
        %734 = vmatprep.subr.mxu0 0.0
        %735 = vmatpush1.msra.mxu0 0.0
        %736 = vmatprep.subr.mxu0 0.0
        %737 = vmatpush1.msra.mxu0 0.0
        %738 = vmatprep.subr.mxu0 0.0
        %739 = vmatpush1.msra.mxu0 0.0
        %740 = vmatprep.subr.mxu0 0.0
        %741 = vmatpush1.msra.mxu0 0.0
        %742 = vmatprep.subr.mxu0 0.0
        %743 = vmatpush1.msra.mxu0 0.0
        %744 = vmatprep.subr.mxu0 0.0
        %745 = vmatpush1.msra.mxu0 0.0
        %746 = vmatprep.subr.mxu0 0.0
        %747 = vmatpush1.msra.mxu0 0.0
        %748 = vmatprep.subr.mxu0 0.0
        %749 = vmatpush1.msra.mxu0 0.0
        %750 = vmatprep.subr.mxu0 0.0
        %751 = vmatpush1.msra.mxu0 0.0
        %752 = vmatprep.subr.mxu0 0.0
        %753 = vmatpush1.msra.mxu0 0.0
        %754 = vmatprep.subr.mxu0 0.0
        %755 = vmatpush1.msra.mxu0 0.0
        %756 = vmatprep.mubr.f32.mxu0 0.0
        %757 = vmatmul.mubr.f32.gmra.mrb[0].mxu0 %v266
        %v758 = vpop.f32.mrb[0].mxu0
        %v759 = vadd.f32 0.0, %v758
        %v760 = vpop.f32.mrb[0].mxu0
        %761 = vmatprep.mubr.f32.mxu0 0.0
        %762 = vmatmul.mubr.f32.gmra.mrb[0].mxu0 %v269
        %v763 = vpop.f32.mrb[0].mxu0
        %v764 = vadd.f32 0.0, %v763
        %v765 = vpop.f32.mrb[0].mxu0
        %766 = vdwg.mxu0
        %v767 = vmul.f32 %v759, 0.95
        %v768 = vmul.f32 %v764, 0.95
        %v769 = vadd.f32 %v684, %v767
        %v770 = vadd.f32 %v685, %v768
        %771 = vst.msk [vmem:[#allocation2 + $0xa0] sm:$0xff] %vm262, %v769
        %772 = vst.msk [vmem:[#allocation2 + $0xa8] sm:$0xff] %vm262, %v770
        %s773 = scalar_lea.vmem %s219, 48 [#allocation3]
        %v774 = vld [vmem:[%s773] sm:$0xff]
        %v775 = vld [vmem:[%s773 + $0x8] sm:$0xff]
        %776 = vst.msk [vmem:[#allocation2 + $0x30] sm:$0xff] %vm262, %v774
        %777 = vst.msk [vmem:[#allocation2 + $0x38] sm:$0xff] %vm262, %v775
        %778 = vmatprep.subr.mxu0 0.0
        %779 = vmatpush1.msra.mxu0 %v774
        %780 = vmatprep.subr.mxu0 0.0
        %781 = vmatpush1.msra.mxu0 %v775
        %782 = vmatprep.subr.mxu0 0.0
        %783 = vmatpush1.msra.mxu0 0.0
        %784 = vmatprep.subr.mxu0 0.0
        %785 = vmatpush1.msra.mxu0 0.0
        %786 = vmatprep.subr.mxu0 0.0
        %787 = vmatpush1.msra.mxu0 0.0
        %788 = vmatprep.subr.mxu0 0.0
        %789 = vmatpush1.msra.mxu0 0.0
        %790 = vmatprep.subr.mxu0 0.0
        %791 = vmatpush1.msra.mxu0 0.0
        %792 = vmatprep.subr.mxu0 0.0
        %793 = vmatpush1.msra.mxu0 0.0
        %794 = vmatprep.subr.mxu0 0.0
        %795 = vmatpush1.msra.mxu0 0.0
        %796 = vmatprep.subr.mxu0 0.0
        %797 = vmatpush1.msra.mxu0 0.0
        %798 = vmatprep.subr.mxu0 0.0
        %799 = vmatpush1.msra.mxu0 0.0
        %800 = vmatprep.subr.mxu0 0.0
        %801 = vmatpush1.msra.mxu0 0.0
        %802 = vmatprep.subr.mxu0 0.0
        %803 = vmatpush1.msra.mxu0 0.0
        %804 = vmatprep.subr.mxu0 0.0
        %805 = vmatpush1.msra.mxu0 0.0
        %806 = vmatprep.subr.mxu0 0.0
        %807 = vmatpush1.msra.mxu0 0.0
        %808 = vmatprep.subr.mxu0 0.0
        %809 = vmatpush1.msra.mxu0 0.0
        %810 = vmatprep.subr.mxu0 0.0
        %811 = vmatpush1.msra.mxu0 0.0
        %812 = vmatprep.subr.mxu0 0.0
        %813 = vmatpush1.msra.mxu0 0.0
        %814 = vmatprep.subr.mxu0 0.0
        %815 = vmatpush1.msra.mxu0 0.0
        %816 = vmatprep.subr.mxu0 0.0
        %817 = vmatpush1.msra.mxu0 0.0
        %818 = vmatprep.subr.mxu0 0.0
        %819 = vmatpush1.msra.mxu0 0.0
        %820 = vmatprep.subr.mxu0 0.0
        %821 = vmatpush1.msra.mxu0 0.0
        %822 = vmatprep.subr.mxu0 0.0
        %823 = vmatpush1.msra.mxu0 0.0
        %824 = vmatprep.subr.mxu0 0.0
        %825 = vmatpush1.msra.mxu0 0.0
        %826 = vmatprep.subr.mxu0 0.0
        %827 = vmatpush1.msra.mxu0 0.0
        %828 = vmatprep.subr.mxu0 0.0
        %829 = vmatpush1.msra.mxu0 0.0
        %830 = vmatprep.subr.mxu0 0.0
        %831 = vmatpush1.msra.mxu0 0.0
        %832 = vmatprep.subr.mxu0 0.0
        %833 = vmatpush1.msra.mxu0 0.0
        %834 = vmatprep.subr.mxu0 0.0
        %835 = vmatpush1.msra.mxu0 0.0
        %836 = vmatprep.subr.mxu0 0.0
        %837 = vmatpush1.msra.mxu0 0.0
        %838 = vmatprep.subr.mxu0 0.0
        %839 = vmatpush1.msra.mxu0 0.0
        %840 = vmatprep.subr.mxu0 0.0
        %841 = vmatpush1.msra.mxu0 0.0
        %842 = vmatprep.mubr.f32.mxu0 0.0
        %843 = vmatmul.mubr.f32.gmra.mrb[0].mxu0 %v266
        %v844 = vpop.f32.mrb[0].mxu0
        %v845 = vadd.f32 0.0, %v844
        %v846 = vpop.f32.mrb[0].mxu0
        %847 = vmatprep.mubr.f32.mxu0 0.0
        %848 = vmatmul.mubr.f32.gmra.mrb[0].mxu0 %v269
        %v849 = vpop.f32.mrb[0].mxu0
        %v850 = vadd.f32 0.0, %v849
        %v851 = vpop.f32.mrb[0].mxu0
        %852 = vdwg.mxu0
        %v853 = vmul.f32 %v774, 0.05
        %v854 = vmul.f32 %v775, 0.05
        %v855 = vmul.f32 %v845, 0.95
        %v856 = vmul.f32 %v850, 0.95
        %v857 = vadd.f32 %v853, %v855
        %v858 = vadd.f32 %v854, %v856
        %859 = vst.msk [vmem:[#allocation2 + $0x70] sm:$0xff] %vm262, %v857
        %860 = vst.msk [vmem:[#allocation2 + $0x78] sm:$0xff] %vm262, %v858
        %861 = vmatprep.subr.mxu0 0.0
        %862 = vmatpush1.msra.mxu0 %v857
        %863 = vmatprep.subr.mxu0 0.0
        %864 = vmatpush1.msra.mxu0 %v858
        %865 = vmatprep.subr.mxu0 0.0
        %866 = vmatpush1.msra.mxu0 0.0
        %867 = vmatprep.subr.mxu0 0.0
        %868 = vmatpush1.msra.mxu0 0.0
        %869 = vmatprep.subr.mxu0 0.0
        %870 = vmatpush1.msra.mxu0 0.0
        %871 = vmatprep.subr.mxu0 0.0
        %872 = vmatpush1.msra.mxu0 0.0
        %873 = vmatprep.subr.mxu0 0.0
        %874 = vmatpush1.msra.mxu0 0.0
        %875 = vmatprep.subr.mxu0 0.0
        %876 = vmatpush1.msra.mxu0 0.0
        %877 = vmatprep.subr.mxu0 0.0
        %878 = vmatpush1.msra.mxu0 0.0
        %879 = vmatprep.subr.mxu0 0.0
        %880 = vmatpush1.msra.mxu0 0.0
        %881 = vmatprep.subr.mxu0 0.0
        %882 = vmatpush1.msra.mxu0 0.0
        %883 = vmatprep.subr.mxu0 0.0
        %884 = vmatpush1.msra.mxu0 0.0
        %885 = vmatprep.subr.mxu0 0.0
        %886 = vmatpush1.msra.mxu0 0.0
        %887 = vmatprep.subr.mxu0 0.0
        %888 = vmatpush1.msra.mxu0 0.0
        %889 = vmatprep.subr.mxu0 0.0
        %890 = vmatpush1.msra.mxu0 0.0
        %891 = vmatprep.subr.mxu0 0.0
        %892 = vmatpush1.msra.mxu0 0.0
        %893 = vmatprep.subr.mxu0 0.0
        %894 = vmatpush1.msra.mxu0 0.0
        %895 = vmatprep.subr.mxu0 0.0
        %896 = vmatpush1.msra.mxu0 0.0
        %897 = vmatprep.subr.mxu0 0.0
        %898 = vmatpush1.msra.mxu0 0.0
        %899 = vmatprep.subr.mxu0 0.0
        %900 = vmatpush1.msra.mxu0 0.0
        %901 = vmatprep.subr.mxu0 0.0
        %902 = vmatpush1.msra.mxu0 0.0
        %903 = vmatprep.subr.mxu0 0.0
        %904 = vmatpush1.msra.mxu0 0.0
        %905 = vmatprep.subr.mxu0 0.0
        %906 = vmatpush1.msra.mxu0 0.0
        %907 = vmatprep.subr.mxu0 0.0
        %908 = vmatpush1.msra.mxu0 0.0
        %909 = vmatprep.subr.mxu0 0.0
        %910 = vmatpush1.msra.mxu0 0.0
        %911 = vmatprep.subr.mxu0 0.0
        %912 = vmatpush1.msra.mxu0 0.0
        %913 = vmatprep.subr.mxu0 0.0
        %914 = vmatpush1.msra.mxu0 0.0
        %915 = vmatprep.subr.mxu0 0.0
        %916 = vmatpush1.msra.mxu0 0.0
        %917 = vmatprep.subr.mxu0 0.0
        %918 = vmatpush1.msra.mxu0 0.0
        %919 = vmatprep.subr.mxu0 0.0
        %920 = vmatpush1.msra.mxu0 0.0
        %921 = vmatprep.subr.mxu0 0.0
        %922 = vmatpush1.msra.mxu0 0.0
        %923 = vmatprep.subr.mxu0 0.0
        %924 = vmatpush1.msra.mxu0 0.0
        %925 = vmatprep.mubr.f32.mxu0 0.0
        %926 = vmatmul.mubr.f32.gmra.mrb[0].mxu0 %v266
        %v927 = vpop.f32.mrb[0].mxu0
        %v928 = vadd.f32 0.0, %v927
        %v929 = vpop.f32.mrb[0].mxu0
        %930 = vmatprep.mubr.f32.mxu0 0.0
        %931 = vmatmul.mubr.f32.gmra.mrb[0].mxu0 %v269
        %v932 = vpop.f32.mrb[0].mxu0
        %v933 = vadd.f32 0.0, %v932
        %v934 = vpop.f32.mrb[0].mxu0
        %935 = vdwg.mxu0
        %v936 = vmul.f32 %v928, 0.95
        %v937 = vmul.f32 %v933, 0.95
        %v938 = vadd.f32 %v853, %v936
        %v939 = vadd.f32 %v854, %v937
        %940 = vst.msk [vmem:[#allocation2 + $0xb0] sm:$0xff] %vm262, %v938
        %941 = vst.msk [vmem:[#allocation2 + $0xb8] sm:$0xff] %vm262, %v939
        %v942 = vld [vmem:[#allocation2] ss:$16 sm:$0x3]
        %v943 = vld [vmem:[#allocation2] ss:$16 sm:$0xc]
        %v944 = vor.u32 %v942, %v943
        %v945 = vld [vmem:[#allocation2] ss:$16 sm:$0x30]
        %v946 = vor.u32 %v944, %v945
        %v947 = vld [vmem:[#allocation2] ss:$16 sm:$0xc0]
        %v948 = vor.u32 %v946, %v947
        %s949 = scalar_lea.vmem [#allocation2], 128
        %v950 = vld [vmem:[%s949] ss:$16 sm:$0x3]
        %v951 = vld [vmem:[%s949] ss:$16 sm:$0xc]
        %v952 = vor.u32 %v950, %v951
        %954 = vset.pattern.permute.xlu0 0
        %955 = vperm.xlu0 %954, %v259
        %v956 = vpop.permute.xlu0 %955
        %vm958 = vcmask 97280
        %v960 = vsel %vm958, %v258, 0
        %vm962 = vcmask 1043456
        %v964 = vsel %vm962, %v952, 0
        %966 = vmatprep.subr.mxu0 0.0
        %967 = vmatpush1.msra.mxu0 %v948
        %968 = vmatprep.subr.mxu0 0.0
        %969 = vmatpush1.msra.mxu0 %v964
        %970 = vmatprep.subr.mxu0 0.0
        %971 = vmatpush1.msra.mxu0 0.0
        %972 = vmatprep.subr.mxu0 0.0
        %973 = vmatpush1.msra.mxu0 0.0
        %974 = vmatprep.subr.mxu0 0.0
        %975 = vmatpush1.msra.mxu0 0.0
        %976 = vmatprep.subr.mxu0 0.0
        %977 = vmatpush1.msra.mxu0 0.0
        %978 = vmatprep.subr.mxu0 0.0
        %979 = vmatpush1.msra.mxu0 0.0
        %980 = vmatprep.subr.mxu0 0.0
        %981 = vmatpush1.msra.mxu0 0.0
        %982 = vmatprep.subr.mxu0 0.0
        %983 = vmatpush1.msra.mxu0 0.0
        %984 = vmatprep.subr.mxu0 0.0
        %985 = vmatpush1.msra.mxu0 0.0
        %986 = vmatprep.subr.mxu0 0.0
        %987 = vmatpush1.msra.mxu0 0.0
        %988 = vmatprep.subr.mxu0 0.0
        %989 = vmatpush1.msra.mxu0 0.0
        %990 = vmatprep.subr.mxu0 0.0
        %991 = vmatpush1.msra.mxu0 0.0
        %992 = vmatprep.subr.mxu0 0.0
        %993 = vmatpush1.msra.mxu0 0.0
        %994 = vmatprep.subr.mxu0 0.0
        %995 = vmatpush1.msra.mxu0 0.0
        %996 = vmatprep.subr.mxu0 0.0
        %997 = vmatpush1.msra.mxu0 0.0
        %998 = vmatprep.subr.mxu0 0.0
        %999 = vmatpush1.msra.mxu0 0.0
        %1000 = vmatprep.subr.mxu0 0.0
        %1001 = vmatpush1.msra.mxu0 0.0
        %1002 = vmatprep.subr.mxu0 0.0
        %1003 = vmatpush1.msra.mxu0 0.0
        %1004 = vmatprep.subr.mxu0 0.0
        %1005 = vmatpush1.msra.mxu0 0.0
        %1006 = vmatprep.subr.mxu0 0.0
        %1007 = vmatpush1.msra.mxu0 0.0
        %1008 = vmatprep.subr.mxu0 0.0
        %1009 = vmatpush1.msra.mxu0 0.0
        %1010 = vmatprep.subr.mxu0 0.0
        %1011 = vmatpush1.msra.mxu0 0.0
        %1012 = vmatprep.subr.mxu0 0.0
        %1013 = vmatpush1.msra.mxu0 0.0
        %1014 = vmatprep.subr.mxu0 0.0
        %1015 = vmatpush1.msra.mxu0 0.0
        %1016 = vmatprep.subr.mxu0 0.0
        %1017 = vmatpush1.msra.mxu0 0.0
        %1018 = vmatprep.subr.mxu0 0.0
        %1019 = vmatpush1.msra.mxu0 0.0
        %1020 = vmatprep.subr.mxu0 0.0
        %1021 = vmatpush1.msra.mxu0 0.0
        %1022 = vmatprep.subr.mxu0 0.0
        %1023 = vmatpush1.msra.mxu0 0.0
        %1024 = vmatprep.subr.mxu0 0.0
        %1025 = vmatpush1.msra.mxu0 0.0
        %1026 = vmatprep.subr.mxu0 0.0
        %1027 = vmatpush1.msra.mxu0 0.0
        %1028 = vmatprep.subr.mxu0 0.0
        %1029 = vmatpush1.msra.mxu0 0.0
        %1030 = vmatprep.mubr.f32.mxu0 0.0
        %1031 = vmatmul.mubr.f32.gmra.mrb[0].mxu0 %v960
        %v1032 = vpop.f32.mrb[0].mxu0
        %v1033 = vadd.f32 %v956, %v1032
        %v1034 = vpop.f32.mrb[0].mxu0
        %1035 = vdwg.mxu0
        %vm1036 = vcmask 125952
        %1037 = vst.msk [vmem:[%s255] sm:$0xf] %vm1036, %v1033
        %s1038 = scalar_lea.vmem [#allocation2], 1
        %v1039 = vld [vmem:[%s1038] ss:$16 sm:$0x3]
        %v1040 = vld [vmem:[%s1038] ss:$16 sm:$0xc]
        %v1041 = vor.u32 %v1039, %v1040
        %v1042 = vld [vmem:[%s1038] ss:$16 sm:$0x30]
        %v1043 = vor.u32 %v1041, %v1042
        %v1044 = vld [vmem:[%s1038] ss:$16 sm:$0xc0]
        %v1045 = vor.u32 %v1043, %v1044
        %s1046 = scalar_lea.vmem [#allocation2], 129
        %v1047 = vld [vmem:[%s1046] ss:$16 sm:$0x3]
        %v1048 = vld [vmem:[%s1046] ss:$16 sm:$0xc]
        %v1049 = vor.u32 %v1047, %v1048
        %v1051 = vsel %vm962, %v1049, 0
        %1053 = vmatprep.subr.mxu0 0.0
        %1054 = vmatpush1.msra.mxu0 %v1045
        %1055 = vmatprep.subr.mxu0 0.0
        %1056 = vmatpush1.msra.mxu0 %v1051
        %1057 = vmatprep.subr.mxu0 0.0
        %1058 = vmatpush1.msra.mxu0 0.0
        %1059 = vmatprep.subr.mxu0 0.0
        %1060 = vmatpush1.msra.mxu0 0.0
        %1061 = vmatprep.subr.mxu0 0.0
        %1062 = vmatpush1.msra.mxu0 0.0
        %1063 = vmatprep.subr.mxu0 0.0
        %1064 = vmatpush1.msra.mxu0 0.0
        %1065 = vmatprep.subr.mxu0 0.0
        %1066 = vmatpush1.msra.mxu0 0.0
        %1067 = vmatprep.subr.mxu0 0.0
        %1068 = vmatpush1.msra.mxu0 0.0
        %1069 = vmatprep.subr.mxu0 0.0
        %1070 = vmatpush1.msra.mxu0 0.0
        %1071 = vmatprep.subr.mxu0 0.0
        %1072 = vmatpush1.msra.mxu0 0.0
        %1073 = vmatprep.subr.mxu0 0.0
        %1074 = vmatpush1.msra.mxu0 0.0
        %1075 = vmatprep.subr.mxu0 0.0
        %1076 = vmatpush1.msra.mxu0 0.0
        %1077 = vmatprep.subr.mxu0 0.0
        %1078 = vmatpush1.msra.mxu0 0.0
        %1079 = vmatprep.subr.mxu0 0.0
        %1080 = vmatpush1.msra.mxu0 0.0
        %1081 = vmatprep.subr.mxu0 0.0
        %1082 = vmatpush1.msra.mxu0 0.0
        %1083 = vmatprep.subr.mxu0 0.0
        %1084 = vmatpush1.msra.mxu0 0.0
        %1085 = vmatprep.subr.mxu0 0.0
        %1086 = vmatpush1.msra.mxu0 0.0
        %1087 = vmatprep.subr.mxu0 0.0
        %1088 = vmatpush1.msra.mxu0 0.0
        %1089 = vmatprep.subr.mxu0 0.0
        %1090 = vmatpush1.msra.mxu0 0.0
        %1091 = vmatprep.subr.mxu0 0.0
        %1092 = vmatpush1.msra.mxu0 0.0
        %1093 = vmatprep.subr.mxu0 0.0
        %1094 = vmatpush1.msra.mxu0 0.0
        %1095 = vmatprep.subr.mxu0 0.0
        %1096 = vmatpush1.msra.mxu0 0.0
        %1097 = vmatprep.subr.mxu0 0.0
        %1098 = vmatpush1.msra.mxu0 0.0
        %1099 = vmatprep.subr.mxu0 0.0
        %1100 = vmatpush1.msra.mxu0 0.0
        %1101 = vmatprep.subr.mxu0 0.0
        %1102 = vmatpush1.msra.mxu0 0.0
        %1103 = vmatprep.subr.mxu0 0.0
        %1104 = vmatpush1.msra.mxu0 0.0
        %1105 = vmatprep.subr.mxu0 0.0
        %1106 = vmatpush1.msra.mxu0 0.0
        %1107 = vmatprep.subr.mxu0 0.0
        %1108 = vmatpush1.msra.mxu0 0.0
        %1109 = vmatprep.subr.mxu0 0.0
        %1110 = vmatpush1.msra.mxu0 0.0
        %1111 = vmatprep.subr.mxu0 0.0
        %1112 = vmatpush1.msra.mxu0 0.0
        %1113 = vmatprep.subr.mxu0 0.0
        %1114 = vmatpush1.msra.mxu0 0.0
        %1115 = vmatprep.subr.mxu0 0.0
        %1116 = vmatpush1.msra.mxu0 0.0
        %1117 = vmatprep.mubr.f32.mxu0 0.0
        %1118 = vmatmul.mubr.f32.gmra.mrb[0].mxu0 %v960
        %v1119 = vpop.f32.mrb[0].mxu0
        %v1120 = vadd.f32 %v956, %v1119
        %v1121 = vpop.f32.mrb[0].mxu0
        %1122 = vdwg.mxu0
        %1124 = vrot.lane.b32.xlu0 %v1120, 16
        %v1125 = vpop.permute.xlu0 %1124
        %vm1127 = vcmask 257152
        %1128 = vst.msk [vmem:[%s255] sm:$0xf] %vm1127, %v1125
        %s1129 = scalar_lea.vmem [#allocation2], 2
        %v1130 = vld [vmem:[%s1129] ss:$16 sm:$0x3]
        %v1131 = vld [vmem:[%s1129] ss:$16 sm:$0xc]
        %v1132 = vor.u32 %v1130, %v1131
        %v1133 = vld [vmem:[%s1129] ss:$16 sm:$0x30]
        %v1134 = vor.u32 %v1132, %v1133
        %v1135 = vld [vmem:[%s1129] ss:$16 sm:$0xc0]
        %v1136 = vor.u32 %v1134, %v1135
        %s1137 = scalar_lea.vmem [#allocation2], 130
        %v1138 = vld [vmem:[%s1137] ss:$16 sm:$0x3]
        %v1139 = vld [vmem:[%s1137] ss:$16 sm:$0xc]
        %v1140 = vor.u32 %v1138, %v1139
        %v1142 = vsel %vm962, %v1140, 0
        %1144 = vmatprep.subr.mxu0 0.0
        %1145 = vmatpush1.msra.mxu0 %v1136
        %1146 = vmatprep.subr.mxu0 0.0
        %1147 = vmatpush1.msra.mxu0 %v1142
        %1148 = vmatprep.subr.mxu0 0.0
        %1149 = vmatpush1.msra.mxu0 0.0
        %1150 = vmatprep.subr.mxu0 0.0
        %1151 = vmatpush1.msra.mxu0 0.0
        %1152 = vmatprep.subr.mxu0 0.0
        %1153 = vmatpush1.msra.mxu0 0.0
        %1154 = vmatprep.subr.mxu0 0.0
        %1155 = vmatpush1.msra.mxu0 0.0
        %1156 = vmatprep.subr.mxu0 0.0
        %1157 = vmatpush1.msra.mxu0 0.0
        %1158 = vmatprep.subr.mxu0 0.0
        %1159 = vmatpush1.msra.mxu0 0.0
        %1160 = vmatprep.subr.mxu0 0.0
        %1161 = vmatpush1.msra.mxu0 0.0
        %1162 = vmatprep.subr.mxu0 0.0
        %1163 = vmatpush1.msra.mxu0 0.0
        %1164 = vmatprep.subr.mxu0 0.0
        %1165 = vmatpush1.msra.mxu0 0.0
        %1166 = vmatprep.subr.mxu0 0.0
        %1167 = vmatpush1.msra.mxu0 0.0
        %1168 = vmatprep.subr.mxu0 0.0
        %1169 = vmatpush1.msra.mxu0 0.0
        %1170 = vmatprep.subr.mxu0 0.0
        %1171 = vmatpush1.msra.mxu0 0.0
        %1172 = vmatprep.subr.mxu0 0.0
        %1173 = vmatpush1.msra.mxu0 0.0
        %1174 = vmatprep.subr.mxu0 0.0
        %1175 = vmatpush1.msra.mxu0 0.0
        %1176 = vmatprep.subr.mxu0 0.0
        %1177 = vmatpush1.msra.mxu0 0.0
        %1178 = vmatprep.subr.mxu0 0.0
        %1179 = vmatpush1.msra.mxu0 0.0
        %1180 = vmatprep.subr.mxu0 0.0
        %1181 = vmatpush1.msra.mxu0 0.0
        %1182 = vmatprep.subr.mxu0 0.0
        %1183 = vmatpush1.msra.mxu0 0.0
        %1184 = vmatprep.subr.mxu0 0.0
        %1185 = vmatpush1.msra.mxu0 0.0
        %1186 = vmatprep.subr.mxu0 0.0
        %1187 = vmatpush1.msra.mxu0 0.0
        %1188 = vmatprep.subr.mxu0 0.0
        %1189 = vmatpush1.msra.mxu0 0.0
        %1190 = vmatprep.subr.mxu0 0.0
        %1191 = vmatpush1.msra.mxu0 0.0
        %1192 = vmatprep.subr.mxu0 0.0
        %1193 = vmatpush1.msra.mxu0 0.0
        %1194 = vmatprep.subr.mxu0 0.0
        %1195 = vmatpush1.msra.mxu0 0.0
        %1196 = vmatprep.subr.mxu0 0.0
        %1197 = vmatpush1.msra.mxu0 0.0
        %1198 = vmatprep.subr.mxu0 0.0
        %1199 = vmatpush1.msra.mxu0 0.0
        %1200 = vmatprep.subr.mxu0 0.0
        %1201 = vmatpush1.msra.mxu0 0.0
        %1202 = vmatprep.subr.mxu0 0.0
        %1203 = vmatpush1.msra.mxu0 0.0
        %1204 = vmatprep.subr.mxu0 0.0
        %1205 = vmatpush1.msra.mxu0 0.0
        %1206 = vmatprep.subr.mxu0 0.0
        %1207 = vmatpush1.msra.mxu0 0.0
        %1208 = vmatprep.mubr.f32.mxu0 0.0
        %1209 = vmatmul.mubr.f32.gmra.mrb[0].mxu0 %v960
        %v1210 = vpop.f32.mrb[0].mxu0
        %v1211 = vadd.f32 %v956, %v1210
        %v1212 = vpop.f32.mrb[0].mxu0
        %1213 = vdwg.mxu0
        %1215 = vrot.lane.b32.xlu0 %v1211, 32
        %v1216 = vpop.permute.xlu0 %1215
        %vm1218 = vcmask 388352
        %1219 = vst.msk [vmem:[%s255] sm:$0xf] %vm1218, %v1216
        %s1220 = scalar_lea.vmem [#allocation2], 3
        %v1221 = vld [vmem:[%s1220] ss:$16 sm:$0x3]
        %v1222 = vld [vmem:[%s1220] ss:$16 sm:$0xc]
        %v1223 = vor.u32 %v1221, %v1222
        %v1224 = vld [vmem:[%s1220] ss:$16 sm:$0x30]
        %v1225 = vor.u32 %v1223, %v1224
        %v1226 = vld [vmem:[%s1220] ss:$16 sm:$0xc0]
        %v1227 = vor.u32 %v1225, %v1226
        %s1228 = scalar_lea.vmem [#allocation2], 131
        %v1229 = vld [vmem:[%s1228] ss:$16 sm:$0x3]
        %v1230 = vld [vmem:[%s1228] ss:$16 sm:$0xc]
        %v1231 = vor.u32 %v1229, %v1230
        %v1233 = vsel %vm962, %v1231, 0
        %1235 = vmatprep.subr.mxu0 0.0
        %1236 = vmatpush1.msra.mxu0 %v1227
        %1237 = vmatprep.subr.mxu0 0.0
        %1238 = vmatpush1.msra.mxu0 %v1233
        %1239 = vmatprep.subr.mxu0 0.0
        %1240 = vmatpush1.msra.mxu0 0.0
        %1241 = vmatprep.subr.mxu0 0.0
        %1242 = vmatpush1.msra.mxu0 0.0
        %1243 = vmatprep.subr.mxu0 0.0
        %1244 = vmatpush1.msra.mxu0 0.0
        %1245 = vmatprep.subr.mxu0 0.0
        %1246 = vmatpush1.msra.mxu0 0.0
        %1247 = vmatprep.subr.mxu0 0.0
        %1248 = vmatpush1.msra.mxu0 0.0
        %1249 = vmatprep.subr.mxu0 0.0
        %1250 = vmatpush1.msra.mxu0 0.0
        %1251 = vmatprep.subr.mxu0 0.0
        %1252 = vmatpush1.msra.mxu0 0.0
        %1253 = vmatprep.subr.mxu0 0.0
        %1254 = vmatpush1.msra.mxu0 0.0
        %1255 = vmatprep.subr.mxu0 0.0
        %1256 = vmatpush1.msra.mxu0 0.0
        %1257 = vmatprep.subr.mxu0 0.0
        %1258 = vmatpush1.msra.mxu0 0.0
        %1259 = vmatprep.subr.mxu0 0.0
        %1260 = vmatpush1.msra.mxu0 0.0
        %1261 = vmatprep.subr.mxu0 0.0
        %1262 = vmatpush1.msra.mxu0 0.0
        %1263 = vmatprep.subr.mxu0 0.0
        %1264 = vmatpush1.msra.mxu0 0.0
        %1265 = vmatprep.subr.mxu0 0.0
        %1266 = vmatpush1.msra.mxu0 0.0
        %1267 = vmatprep.subr.mxu0 0.0
        %1268 = vmatpush1.msra.mxu0 0.0
        %1269 = vmatprep.subr.mxu0 0.0
        %1270 = vmatpush1.msra.mxu0 0.0
        %1271 = vmatprep.subr.mxu0 0.0
        %1272 = vmatpush1.msra.mxu0 0.0
        %1273 = vmatprep.subr.mxu0 0.0
        %1274 = vmatpush1.msra.mxu0 0.0
        %1275 = vmatprep.subr.mxu0 0.0
        %1276 = vmatpush1.msra.mxu0 0.0
        %1277 = vmatprep.subr.mxu0 0.0
        %1278 = vmatpush1.msra.mxu0 0.0
        %1279 = vmatprep.subr.mxu0 0.0
        %1280 = vmatpush1.msra.mxu0 0.0
        %1281 = vmatprep.subr.mxu0 0.0
        %1282 = vmatpush1.msra.mxu0 0.0
        %1283 = vmatprep.subr.mxu0 0.0
        %1284 = vmatpush1.msra.mxu0 0.0
        %1285 = vmatprep.subr.mxu0 0.0
        %1286 = vmatpush1.msra.mxu0 0.0
        %1287 = vmatprep.subr.mxu0 0.0
        %1288 = vmatpush1.msra.mxu0 0.0
        %1289 = vmatprep.subr.mxu0 0.0
        %1290 = vmatpush1.msra.mxu0 0.0
        %1291 = vmatprep.subr.mxu0 0.0
        %1292 = vmatpush1.msra.mxu0 0.0
        %1293 = vmatprep.subr.mxu0 0.0
        %1294 = vmatpush1.msra.mxu0 0.0
        %1295 = vmatprep.subr.mxu0 0.0
        %1296 = vmatpush1.msra.mxu0 0.0
        %1297 = vmatprep.subr.mxu0 0.0
        %1298 = vmatpush1.msra.mxu0 0.0
        %1299 = vmatprep.mubr.f32.mxu0 0.0
        %1300 = vmatmul.mubr.f32.gmra.mrb[0].mxu0 %v960
        %v1301 = vpop.f32.mrb[0].mxu0
        %v1302 = vadd.f32 %v956, %v1301
        %v1303 = vpop.f32.mrb[0].mxu0
        %1304 = vdwg.mxu0
        %1306 = vrot.lane.b32.xlu0 %v1302, 48
        %v1307 = vpop.permute.xlu0 %1306
        %vm1309 = vcmask 519552
        %1310 = vst.msk [vmem:[%s255] sm:$0xf] %vm1309, %v1307
        %s1311 = scalar_lea.vmem [#allocation2], 4
        %v1312 = vld [vmem:[%s1311] ss:$16 sm:$0x3]
        %v1313 = vld [vmem:[%s1311] ss:$16 sm:$0xc]
        %v1314 = vor.u32 %v1312, %v1313
        %v1315 = vld [vmem:[%s1311] ss:$16 sm:$0x30]
        %v1316 = vor.u32 %v1314, %v1315
        %v1317 = vld [vmem:[%s1311] ss:$16 sm:$0xc0]
        %v1318 = vor.u32 %v1316, %v1317
        %s1319 = scalar_lea.vmem [#allocation2], 132
        %v1320 = vld [vmem:[%s1319] ss:$16 sm:$0x3]
        %v1321 = vld [vmem:[%s1319] ss:$16 sm:$0xc]
        %v1322 = vor.u32 %v1320, %v1321
        %v1324 = vsel %vm962, %v1322, 0
        %1326 = vmatprep.subr.mxu0 0.0
        %1327 = vmatpush1.msra.mxu0 %v1318
        %1328 = vmatprep.subr.mxu0 0.0
        %1329 = vmatpush1.msra.mxu0 %v1324
        %1330 = vmatprep.subr.mxu0 0.0
        %1331 = vmatpush1.msra.mxu0 0.0
        %1332 = vmatprep.subr.mxu0 0.0
        %1333 = vmatpush1.msra.mxu0 0.0
        %1334 = vmatprep.subr.mxu0 0.0
        %1335 = vmatpush1.msra.mxu0 0.0
        %1336 = vmatprep.subr.mxu0 0.0
        %1337 = vmatpush1.msra.mxu0 0.0
        %1338 = vmatprep.subr.mxu0 0.0
        %1339 = vmatpush1.msra.mxu0 0.0
        %1340 = vmatprep.subr.mxu0 0.0
        %1341 = vmatpush1.msra.mxu0 0.0
        %1342 = vmatprep.subr.mxu0 0.0
        %1343 = vmatpush1.msra.mxu0 0.0
        %1344 = vmatprep.subr.mxu0 0.0
        %1345 = vmatpush1.msra.mxu0 0.0
        %1346 = vmatprep.subr.mxu0 0.0
        %1347 = vmatpush1.msra.mxu0 0.0
        %1348 = vmatprep.subr.mxu0 0.0
        %1349 = vmatpush1.msra.mxu0 0.0
        %1350 = vmatprep.subr.mxu0 0.0
        %1351 = vmatpush1.msra.mxu0 0.0
        %1352 = vmatprep.subr.mxu0 0.0
        %1353 = vmatpush1.msra.mxu0 0.0
        %1354 = vmatprep.subr.mxu0 0.0
        %1355 = vmatpush1.msra.mxu0 0.0
        %1356 = vmatprep.subr.mxu0 0.0
        %1357 = vmatpush1.msra.mxu0 0.0
        %1358 = vmatprep.subr.mxu0 0.0
        %1359 = vmatpush1.msra.mxu0 0.0
        %1360 = vmatprep.subr.mxu0 0.0
        %1361 = vmatpush1.msra.mxu0 0.0
        %1362 = vmatprep.subr.mxu0 0.0
        %1363 = vmatpush1.msra.mxu0 0.0
        %1364 = vmatprep.subr.mxu0 0.0
        %1365 = vmatpush1.msra.mxu0 0.0
        %1366 = vmatprep.subr.mxu0 0.0
        %1367 = vmatpush1.msra.mxu0 0.0
        %1368 = vmatprep.subr.mxu0 0.0
        %1369 = vmatpush1.msra.mxu0 0.0
        %1370 = vmatprep.subr.mxu0 0.0
        %1371 = vmatpush1.msra.mxu0 0.0
        %1372 = vmatprep.subr.mxu0 0.0
        %1373 = vmatpush1.msra.mxu0 0.0
        %1374 = vmatprep.subr.mxu0 0.0
        %1375 = vmatpush1.msra.mxu0 0.0
        %1376 = vmatprep.subr.mxu0 0.0
        %1377 = vmatpush1.msra.mxu0 0.0
        %1378 = vmatprep.subr.mxu0 0.0
        %1379 = vmatpush1.msra.mxu0 0.0
        %1380 = vmatprep.subr.mxu0 0.0
        %1381 = vmatpush1.msra.mxu0 0.0
        %1382 = vmatprep.subr.mxu0 0.0
        %1383 = vmatpush1.msra.mxu0 0.0
        %1384 = vmatprep.subr.mxu0 0.0
        %1385 = vmatpush1.msra.mxu0 0.0
        %1386 = vmatprep.subr.mxu0 0.0
        %1387 = vmatpush1.msra.mxu0 0.0
        %1388 = vmatprep.subr.mxu0 0.0
        %1389 = vmatpush1.msra.mxu0 0.0
        %1390 = vmatprep.mubr.f32.mxu0 0.0
        %1391 = vmatmul.mubr.f32.gmra.mrb[0].mxu0 %v960
        %v1392 = vpop.f32.mrb[0].mxu0
        %v1393 = vadd.f32 %v956, %v1392
        %v1394 = vpop.f32.mrb[0].mxu0
        %1395 = vdwg.mxu0
        %1397 = vrot.lane.b32.xlu0 %v1393, 64
        %v1398 = vpop.permute.xlu0 %1397
        %vm1400 = vcmask 650752
        %1401 = vst.msk [vmem:[%s255] sm:$0xf] %vm1400, %v1398
        %s1402 = scalar_lea.vmem [#allocation2], 5
        %v1403 = vld [vmem:[%s1402] ss:$16 sm:$0x3]
        %v1404 = vld [vmem:[%s1402] ss:$16 sm:$0xc]
        %v1405 = vor.u32 %v1403, %v1404
        %v1406 = vld [vmem:[%s1402] ss:$16 sm:$0x30]
        %v1407 = vor.u32 %v1405, %v1406
        %v1408 = vld [vmem:[%s1402] ss:$16 sm:$0xc0]
        %v1409 = vor.u32 %v1407, %v1408
        %s1410 = scalar_lea.vmem [#allocation2], 133
        %v1411 = vld [vmem:[%s1410] ss:$16 sm:$0x3]
        %v1412 = vld [vmem:[%s1410] ss:$16 sm:$0xc]
        %v1413 = vor.u32 %v1411, %v1412
        %v1415 = vsel %vm962, %v1413, 0
        %1417 = vmatprep.subr.mxu0 0.0
        %1418 = vmatpush1.msra.mxu0 %v1409
        %1419 = vmatprep.subr.mxu0 0.0
        %1420 = vmatpush1.msra.mxu0 %v1415
        %1421 = vmatprep.subr.mxu0 0.0
        %1422 = vmatpush1.msra.mxu0 0.0
        %1423 = vmatprep.subr.mxu0 0.0
        %1424 = vmatpush1.msra.mxu0 0.0
        %1425 = vmatprep.subr.mxu0 0.0
        %1426 = vmatpush1.msra.mxu0 0.0
        %1427 = vmatprep.subr.mxu0 0.0
        %1428 = vmatpush1.msra.mxu0 0.0
        %1429 = vmatprep.subr.mxu0 0.0
        %1430 = vmatpush1.msra.mxu0 0.0
        %1431 = vmatprep.subr.mxu0 0.0
        %1432 = vmatpush1.msra.mxu0 0.0
        %1433 = vmatprep.subr.mxu0 0.0
        %1434 = vmatpush1.msra.mxu0 0.0
        %1435 = vmatprep.subr.mxu0 0.0
        %1436 = vmatpush1.msra.mxu0 0.0
        %1437 = vmatprep.subr.mxu0 0.0
        %1438 = vmatpush1.msra.mxu0 0.0
        %1439 = vmatprep.subr.mxu0 0.0
        %1440 = vmatpush1.msra.mxu0 0.0
        %1441 = vmatprep.subr.mxu0 0.0
        %1442 = vmatpush1.msra.mxu0 0.0
        %1443 = vmatprep.subr.mxu0 0.0
        %1444 = vmatpush1.msra.mxu0 0.0
        %1445 = vmatprep.subr.mxu0 0.0
        %1446 = vmatpush1.msra.mxu0 0.0
        %1447 = vmatprep.subr.mxu0 0.0
        %1448 = vmatpush1.msra.mxu0 0.0
        %1449 = vmatprep.subr.mxu0 0.0
        %1450 = vmatpush1.msra.mxu0 0.0
        %1451 = vmatprep.subr.mxu0 0.0
        %1452 = vmatpush1.msra.mxu0 0.0
        %1453 = vmatprep.subr.mxu0 0.0
        %1454 = vmatpush1.msra.mxu0 0.0
        %1455 = vmatprep.subr.mxu0 0.0
        %1456 = vmatpush1.msra.mxu0 0.0
        %1457 = vmatprep.subr.mxu0 0.0
        %1458 = vmatpush1.msra.mxu0 0.0
        %1459 = vmatprep.subr.mxu0 0.0
        %1460 = vmatpush1.msra.mxu0 0.0
        %1461 = vmatprep.subr.mxu0 0.0
        %1462 = vmatpush1.msra.mxu0 0.0
        %1463 = vmatprep.subr.mxu0 0.0
        %1464 = vmatpush1.msra.mxu0 0.0
        %1465 = vmatprep.subr.mxu0 0.0
        %1466 = vmatpush1.msra.mxu0 0.0
        %1467 = vmatprep.subr.mxu0 0.0
        %1468 = vmatpush1.msra.mxu0 0.0
        %1469 = vmatprep.subr.mxu0 0.0
        %1470 = vmatpush1.msra.mxu0 0.0
        %1471 = vmatprep.subr.mxu0 0.0
        %1472 = vmatpush1.msra.mxu0 0.0
        %1473 = vmatprep.subr.mxu0 0.0
        %1474 = vmatpush1.msra.mxu0 0.0
        %1475 = vmatprep.subr.mxu0 0.0
        %1476 = vmatpush1.msra.mxu0 0.0
        %1477 = vmatprep.subr.mxu0 0.0
        %1478 = vmatpush1.msra.mxu0 0.0
        %1479 = vmatprep.subr.mxu0 0.0
        %1480 = vmatpush1.msra.mxu0 0.0
        %1481 = vmatprep.mubr.f32.mxu0 0.0
        %1482 = vmatmul.mubr.f32.gmra.mrb[0].mxu0 %v960
        %v1483 = vpop.f32.mrb[0].mxu0
        %v1484 = vadd.f32 %v956, %v1483
        %v1485 = vpop.f32.mrb[0].mxu0
        %1486 = vdwg.mxu0
        %1488 = vrot.lane.b32.xlu0 %v1484, 80
        %v1489 = vpop.permute.xlu0 %1488
        %vm1491 = vcmask 781952
        %1492 = vst.msk [vmem:[%s255] sm:$0xf] %vm1491, %v1489
        %s1493 = scalar_lea.vmem [#allocation2], 6
        %v1494 = vld [vmem:[%s1493] ss:$16 sm:$0x3]
        %v1495 = vld [vmem:[%s1493] ss:$16 sm:$0xc]
        %v1496 = vor.u32 %v1494, %v1495
        %v1497 = vld [vmem:[%s1493] ss:$16 sm:$0x30]
        %v1498 = vor.u32 %v1496, %v1497
        %v1499 = vld [vmem:[%s1493] ss:$16 sm:$0xc0]
        %v1500 = vor.u32 %v1498, %v1499
        %s1501 = scalar_lea.vmem [#allocation2], 134
        %v1502 = vld [vmem:[%s1501] ss:$16 sm:$0x3]
        %v1503 = vld [vmem:[%s1501] ss:$16 sm:$0xc]
        %v1504 = vor.u32 %v1502, %v1503
        %v1506 = vsel %vm962, %v1504, 0
        %1508 = vmatprep.subr.mxu0 0.0
        %1509 = vmatpush1.msra.mxu0 %v1500
        %1510 = vmatprep.subr.mxu0 0.0
        %1511 = vmatpush1.msra.mxu0 %v1506
        %1512 = vmatprep.subr.mxu0 0.0
        %1513 = vmatpush1.msra.mxu0 0.0
        %1514 = vmatprep.subr.mxu0 0.0
        %1515 = vmatpush1.msra.mxu0 0.0
        %1516 = vmatprep.subr.mxu0 0.0
        %1517 = vmatpush1.msra.mxu0 0.0
        %1518 = vmatprep.subr.mxu0 0.0
        %1519 = vmatpush1.msra.mxu0 0.0
        %1520 = vmatprep.subr.mxu0 0.0
        %1521 = vmatpush1.msra.mxu0 0.0
        %1522 = vmatprep.subr.mxu0 0.0
        %1523 = vmatpush1.msra.mxu0 0.0
        %1524 = vmatprep.subr.mxu0 0.0
        %1525 = vmatpush1.msra.mxu0 0.0
        %1526 = vmatprep.subr.mxu0 0.0
        %1527 = vmatpush1.msra.mxu0 0.0
        %1528 = vmatprep.subr.mxu0 0.0
        %1529 = vmatpush1.msra.mxu0 0.0
        %1530 = vmatprep.subr.mxu0 0.0
        %1531 = vmatpush1.msra.mxu0 0.0
        %1532 = vmatprep.subr.mxu0 0.0
        %1533 = vmatpush1.msra.mxu0 0.0
        %1534 = vmatprep.subr.mxu0 0.0
        %1535 = vmatpush1.msra.mxu0 0.0
        %1536 = vmatprep.subr.mxu0 0.0
        %1537 = vmatpush1.msra.mxu0 0.0
        %1538 = vmatprep.subr.mxu0 0.0
        %1539 = vmatpush1.msra.mxu0 0.0
        %1540 = vmatprep.subr.mxu0 0.0
        %1541 = vmatpush1.msra.mxu0 0.0
        %1542 = vmatprep.subr.mxu0 0.0
        %1543 = vmatpush1.msra.mxu0 0.0
        %1544 = vmatprep.subr.mxu0 0.0
        %1545 = vmatpush1.msra.mxu0 0.0
        %1546 = vmatprep.subr.mxu0 0.0
        %1547 = vmatpush1.msra.mxu0 0.0
        %1548 = vmatprep.subr.mxu0 0.0
        %1549 = vmatpush1.msra.mxu0 0.0
        %1550 = vmatprep.subr.mxu0 0.0
        %1551 = vmatpush1.msra.mxu0 0.0
        %1552 = vmatprep.subr.mxu0 0.0
        %1553 = vmatpush1.msra.mxu0 0.0
        %1554 = vmatprep.subr.mxu0 0.0
        %1555 = vmatpush1.msra.mxu0 0.0
        %1556 = vmatprep.subr.mxu0 0.0
        %1557 = vmatpush1.msra.mxu0 0.0
        %1558 = vmatprep.subr.mxu0 0.0
        %1559 = vmatpush1.msra.mxu0 0.0
        %1560 = vmatprep.subr.mxu0 0.0
        %1561 = vmatpush1.msra.mxu0 0.0
        %1562 = vmatprep.subr.mxu0 0.0
        %1563 = vmatpush1.msra.mxu0 0.0
        %1564 = vmatprep.subr.mxu0 0.0
        %1565 = vmatpush1.msra.mxu0 0.0
        %1566 = vmatprep.subr.mxu0 0.0
        %1567 = vmatpush1.msra.mxu0 0.0
        %1568 = vmatprep.subr.mxu0 0.0
        %1569 = vmatpush1.msra.mxu0 0.0
        %1570 = vmatprep.subr.mxu0 0.0
        %1571 = vmatpush1.msra.mxu0 0.0
        %1572 = vmatprep.mubr.f32.mxu0 0.0
        %1573 = vmatmul.mubr.f32.gmra.mrb[0].mxu0 %v960
        %v1574 = vpop.f32.mrb[0].mxu0
        %v1575 = vadd.f32 %v956, %v1574
        %v1576 = vpop.f32.mrb[0].mxu0
        %1577 = vdwg.mxu0
        %1579 = vrot.lane.b32.xlu0 %v1575, 96
        %v1580 = vpop.permute.xlu0 %1579
        %vm1582 = vcmask 913152
        %1583 = vst.msk [vmem:[%s255] sm:$0xf] %vm1582, %v1580
        %s1584 = scalar_lea.vmem [#allocation2], 7
        %v1585 = vld [vmem:[%s1584] ss:$16 sm:$0x3]
        %v1586 = vld [vmem:[%s1584] ss:$16 sm:$0xc]
        %v1587 = vor.u32 %v1585, %v1586
        %v1588 = vld [vmem:[%s1584] ss:$16 sm:$0x30]
        %v1589 = vor.u32 %v1587, %v1588
        %v1590 = vld [vmem:[%s1584] ss:$16 sm:$0xc0]
        %v1591 = vor.u32 %v1589, %v1590
        %s1592 = scalar_lea.vmem [#allocation2], 135
        %v1593 = vld [vmem:[%s1592] ss:$16 sm:$0x3]
        %v1594 = vld [vmem:[%s1592] ss:$16 sm:$0xc]
        %v1595 = vor.u32 %v1593, %v1594
        %v1597 = vsel %vm962, %v1595, 0
        %1599 = vmatprep.subr.mxu0 0.0
        %1600 = vmatpush1.msra.mxu0 %v1591
        %1601 = vmatprep.subr.mxu0 0.0
        %1602 = vmatpush1.msra.mxu0 %v1597
        %1603 = vmatprep.subr.mxu0 0.0
        %1604 = vmatpush1.msra.mxu0 0.0
        %1605 = vmatprep.subr.mxu0 0.0
        %1606 = vmatpush1.msra.mxu0 0.0
        %1607 = vmatprep.subr.mxu0 0.0
        %1608 = vmatpush1.msra.mxu0 0.0
        %1609 = vmatprep.subr.mxu0 0.0
        %1610 = vmatpush1.msra.mxu0 0.0
        %1611 = vmatprep.subr.mxu0 0.0
        %1612 = vmatpush1.msra.mxu0 0.0
        %1613 = vmatprep.subr.mxu0 0.0
        %1614 = vmatpush1.msra.mxu0 0.0
        %1615 = vmatprep.subr.mxu0 0.0
        %1616 = vmatpush1.msra.mxu0 0.0
        %1617 = vmatprep.subr.mxu0 0.0
        %1618 = vmatpush1.msra.mxu0 0.0
        %1619 = vmatprep.subr.mxu0 0.0
        %1620 = vmatpush1.msra.mxu0 0.0
        %1621 = vmatprep.subr.mxu0 0.0
        %1622 = vmatpush1.msra.mxu0 0.0
        %1623 = vmatprep.subr.mxu0 0.0
        %1624 = vmatpush1.msra.mxu0 0.0
        %1625 = vmatprep.subr.mxu0 0.0
        %1626 = vmatpush1.msra.mxu0 0.0
        %1627 = vmatprep.subr.mxu0 0.0
        %1628 = vmatpush1.msra.mxu0 0.0
        %1629 = vmatprep.subr.mxu0 0.0
        %1630 = vmatpush1.msra.mxu0 0.0
        %1631 = vmatprep.subr.mxu0 0.0
        %1632 = vmatpush1.msra.mxu0 0.0
        %1633 = vmatprep.subr.mxu0 0.0
        %1634 = vmatpush1.msra.mxu0 0.0
        %1635 = vmatprep.subr.mxu0 0.0
        %1636 = vmatpush1.msra.mxu0 0.0
        %1637 = vmatprep.subr.mxu0 0.0
        %1638 = vmatpush1.msra.mxu0 0.0
        %1639 = vmatprep.subr.mxu0 0.0
        %1640 = vmatpush1.msra.mxu0 0.0
        %1641 = vmatprep.subr.mxu0 0.0
        %1642 = vmatpush1.msra.mxu0 0.0
        %1643 = vmatprep.subr.mxu0 0.0
        %1644 = vmatpush1.msra.mxu0 0.0
        %1645 = vmatprep.subr.mxu0 0.0
        %1646 = vmatpush1.msra.mxu0 0.0
        %1647 = vmatprep.subr.mxu0 0.0
        %1648 = vmatpush1.msra.mxu0 0.0
        %1649 = vmatprep.subr.mxu0 0.0
        %1650 = vmatpush1.msra.mxu0 0.0
        %1651 = vmatprep.subr.mxu0 0.0
        %1652 = vmatpush1.msra.mxu0 0.0
        %1653 = vmatprep.subr.mxu0 0.0
        %1654 = vmatpush1.msra.mxu0 0.0
        %1655 = vmatprep.subr.mxu0 0.0
        %1656 = vmatpush1.msra.mxu0 0.0
        %1657 = vmatprep.subr.mxu0 0.0
        %1658 = vmatpush1.msra.mxu0 0.0
        %1659 = vmatprep.subr.mxu0 0.0
        %1660 = vmatpush1.msra.mxu0 0.0
        %1661 = vmatprep.subr.mxu0 0.0
        %1662 = vmatpush1.msra.mxu0 0.0
        %1663 = vmatprep.mubr.f32.mxu0 0.0
        %1664 = vmatmul.mubr.f32.gmra.mrb[0].mxu0 %v960
        %v1665 = vpop.f32.mrb[0].mxu0
        %v1666 = vadd.f32 %v956, %v1665
        %v1667 = vpop.f32.mrb[0].mxu0
        %1668 = vdwg.mxu0
        %1670 = vrot.lane.b32.xlu0 %v1666, 112
        %v1671 = vpop.permute.xlu0 %1670
        %vm1673 = vcmask 1044352
        %1674 = vst.msk [vmem:[%s255] sm:$0xf] %vm1673, %v1671
        %s1675 = scalar_lea.vmem [#allocation2], 8
        %v1676 = vld [vmem:[%s1675] ss:$16 sm:$0x3]
        %v1677 = vld [vmem:[%s1675] ss:$16 sm:$0xc]
        %v1678 = vor.u32 %v1676, %v1677
        %v1679 = vld [vmem:[%s1675] ss:$16 sm:$0x30]
        %v1680 = vor.u32 %v1678, %v1679
        %v1681 = vld [vmem:[%s1675] ss:$16 sm:$0xc0]
        %v1682 = vor.u32 %v1680, %v1681
        %s1683 = scalar_lea.vmem [#allocation2], 136
        %v1684 = vld [vmem:[%s1683] ss:$16 sm:$0x3]
        %v1685 = vld [vmem:[%s1683] ss:$16 sm:$0xc]
        %v1686 = vor.u32 %v1684, %v1685
        %v1688 = vsel %vm962, %v1686, 0
        %1690 = vmatprep.subr.mxu0 0.0
        %1691 = vmatpush1.msra.mxu0 %v1682
        %1692 = vmatprep.subr.mxu0 0.0
        %1693 = vmatpush1.msra.mxu0 %v1688
        %1694 = vmatprep.subr.mxu0 0.0
        %1695 = vmatpush1.msra.mxu0 0.0
        %1696 = vmatprep.subr.mxu0 0.0
        %1697 = vmatpush1.msra.mxu0 0.0
        %1698 = vmatprep.subr.mxu0 0.0
        %1699 = vmatpush1.msra.mxu0 0.0
        %1700 = vmatprep.subr.mxu0 0.0
        %1701 = vmatpush1.msra.mxu0 0.0
        %1702 = vmatprep.subr.mxu0 0.0
        %1703 = vmatpush1.msra.mxu0 0.0
        %1704 = vmatprep.subr.mxu0 0.0
        %1705 = vmatpush1.msra.mxu0 0.0
        %1706 = vmatprep.subr.mxu0 0.0
        %1707 = vmatpush1.msra.mxu0 0.0
        %1708 = vmatprep.subr.mxu0 0.0
        %1709 = vmatpush1.msra.mxu0 0.0
        %1710 = vmatprep.subr.mxu0 0.0
        %1711 = vmatpush1.msra.mxu0 0.0
        %1712 = vmatprep.subr.mxu0 0.0
        %1713 = vmatpush1.msra.mxu0 0.0
        %1714 = vmatprep.subr.mxu0 0.0
        %1715 = vmatpush1.msra.mxu0 0.0
        %1716 = vmatprep.subr.mxu0 0.0
        %1717 = vmatpush1.msra.mxu0 0.0
        %1718 = vmatprep.subr.mxu0 0.0
        %1719 = vmatpush1.msra.mxu0 0.0
        %1720 = vmatprep.subr.mxu0 0.0
        %1721 = vmatpush1.msra.mxu0 0.0
        %1722 = vmatprep.subr.mxu0 0.0
        %1723 = vmatpush1.msra.mxu0 0.0
        %1724 = vmatprep.subr.mxu0 0.0
        %1725 = vmatpush1.msra.mxu0 0.0
        %1726 = vmatprep.subr.mxu0 0.0
        %1727 = vmatpush1.msra.mxu0 0.0
        %1728 = vmatprep.subr.mxu0 0.0
        %1729 = vmatpush1.msra.mxu0 0.0
        %1730 = vmatprep.subr.mxu0 0.0
        %1731 = vmatpush1.msra.mxu0 0.0
        %1732 = vmatprep.subr.mxu0 0.0
        %1733 = vmatpush1.msra.mxu0 0.0
        %1734 = vmatprep.subr.mxu0 0.0
        %1735 = vmatpush1.msra.mxu0 0.0
        %1736 = vmatprep.subr.mxu0 0.0
        %1737 = vmatpush1.msra.mxu0 0.0
        %1738 = vmatprep.subr.mxu0 0.0
        %1739 = vmatpush1.msra.mxu0 0.0
        %1740 = vmatprep.subr.mxu0 0.0
        %1741 = vmatpush1.msra.mxu0 0.0
        %1742 = vmatprep.subr.mxu0 0.0
        %1743 = vmatpush1.msra.mxu0 0.0
        %1744 = vmatprep.subr.mxu0 0.0
        %1745 = vmatpush1.msra.mxu0 0.0
        %1746 = vmatprep.subr.mxu0 0.0
        %1747 = vmatpush1.msra.mxu0 0.0
        %1748 = vmatprep.subr.mxu0 0.0
        %1749 = vmatpush1.msra.mxu0 0.0
        %1750 = vmatprep.subr.mxu0 0.0
        %1751 = vmatpush1.msra.mxu0 0.0
        %1752 = vmatprep.subr.mxu0 0.0
        %1753 = vmatpush1.msra.mxu0 0.0
        %1754 = vmatprep.mubr.f32.mxu0 0.0
        %1755 = vmatmul.mubr.f32.gmra.mrb[0].mxu0 %v960
        %v1756 = vpop.f32.mrb[0].mxu0
        %v1757 = vadd.f32 %v956, %v1756
        %v1758 = vpop.f32.mrb[0].mxu0
        %1759 = vdwg.mxu0
        %1760 = vst.msk [vmem:[%s255 + $0x4] sm:$0xf] %vm1036, %v1757
        %s1761 = scalar_lea.vmem [#allocation2], 9
        %v1762 = vld [vmem:[%s1761] ss:$16 sm:$0x3]
        %v1763 = vld [vmem:[%s1761] ss:$16 sm:$0xc]
        %v1764 = vor.u32 %v1762, %v1763
        %v1765 = vld [vmem:[%s1761] ss:$16 sm:$0x30]
        %v1766 = vor.u32 %v1764, %v1765
        %v1767 = vld [vmem:[%s1761] ss:$16 sm:$0xc0]
        %v1768 = vor.u32 %v1766, %v1767
        %s1769 = scalar_lea.vmem [#allocation2], 137
        %v1770 = vld [vmem:[%s1769] ss:$16 sm:$0x3]
        %v1771 = vld [vmem:[%s1769] ss:$16 sm:$0xc]
        %v1772 = vor.u32 %v1770, %v1771
        %v1774 = vsel %vm962, %v1772, 0
        %1776 = vmatprep.subr.mxu0 0.0
        %1777 = vmatpush1.msra.mxu0 %v1768
        %1778 = vmatprep.subr.mxu0 0.0
        %1779 = vmatpush1.msra.mxu0 %v1774
        %1780 = vmatprep.subr.mxu0 0.0
        %1781 = vmatpush1.msra.mxu0 0.0
        %1782 = vmatprep.subr.mxu0 0.0
        %1783 = vmatpush1.msra.mxu0 0.0
        %1784 = vmatprep.subr.mxu0 0.0
        %1785 = vmatpush1.msra.mxu0 0.0
        %1786 = vmatprep.subr.mxu0 0.0
        %1787 = vmatpush1.msra.mxu0 0.0
        %1788 = vmatprep.subr.mxu0 0.0
        %1789 = vmatpush1.msra.mxu0 0.0
        %1790 = vmatprep.subr.mxu0 0.0
        %1791 = vmatpush1.msra.mxu0 0.0
        %1792 = vmatprep.subr.mxu0 0.0
        %1793 = vmatpush1.msra.mxu0 0.0
        %1794 = vmatprep.subr.mxu0 0.0
        %1795 = vmatpush1.msra.mxu0 0.0
        %1796 = vmatprep.subr.mxu0 0.0
        %1797 = vmatpush1.msra.mxu0 0.0
        %1798 = vmatprep.subr.mxu0 0.0
        %1799 = vmatpush1.msra.mxu0 0.0
        %1800 = vmatprep.subr.mxu0 0.0
        %1801 = vmatpush1.msra.mxu0 0.0
        %1802 = vmatprep.subr.mxu0 0.0
        %1803 = vmatpush1.msra.mxu0 0.0
        %1804 = vmatprep.subr.mxu0 0.0
        %1805 = vmatpush1.msra.mxu0 0.0
        %1806 = vmatprep.subr.mxu0 0.0
        %1807 = vmatpush1.msra.mxu0 0.0
        %1808 = vmatprep.subr.mxu0 0.0
        %1809 = vmatpush1.msra.mxu0 0.0
        %1810 = vmatprep.subr.mxu0 0.0
        %1811 = vmatpush1.msra.mxu0 0.0
        %1812 = vmatprep.subr.mxu0 0.0
        %1813 = vmatpush1.msra.mxu0 0.0
        %1814 = vmatprep.subr.mxu0 0.0
        %1815 = vmatpush1.msra.mxu0 0.0
        %1816 = vmatprep.subr.mxu0 0.0
        %1817 = vmatpush1.msra.mxu0 0.0
        %1818 = vmatprep.subr.mxu0 0.0
        %1819 = vmatpush1.msra.mxu0 0.0
        %1820 = vmatprep.subr.mxu0 0.0
        %1821 = vmatpush1.msra.mxu0 0.0
        %1822 = vmatprep.subr.mxu0 0.0
        %1823 = vmatpush1.msra.mxu0 0.0
        %1824 = vmatprep.subr.mxu0 0.0
        %1825 = vmatpush1.msra.mxu0 0.0
        %1826 = vmatprep.subr.mxu0 0.0
        %1827 = vmatpush1.msra.mxu0 0.0
        %1828 = vmatprep.subr.mxu0 0.0
        %1829 = vmatpush1.msra.mxu0 0.0
        %1830 = vmatprep.subr.mxu0 0.0
        %1831 = vmatpush1.msra.mxu0 0.0
        %1832 = vmatprep.subr.mxu0 0.0
        %1833 = vmatpush1.msra.mxu0 0.0
        %1834 = vmatprep.subr.mxu0 0.0
        %1835 = vmatpush1.msra.mxu0 0.0
        %1836 = vmatprep.subr.mxu0 0.0
        %1837 = vmatpush1.msra.mxu0 0.0
        %1838 = vmatprep.subr.mxu0 0.0
        %1839 = vmatpush1.msra.mxu0 0.0
        %1840 = vmatprep.mubr.f32.mxu0 0.0
        %1841 = vmatmul.mubr.f32.gmra.mrb[0].mxu0 %v960
        %v1842 = vpop.f32.mrb[0].mxu0
        %v1843 = vadd.f32 %v956, %v1842
        %v1844 = vpop.f32.mrb[0].mxu0
        %1845 = vdwg.mxu0
        %1847 = vrot.lane.b32.xlu0 %v1843, 16
        %v1848 = vpop.permute.xlu0 %1847
        %1850 = vst.msk [vmem:[%s255 + $0x4] sm:$0xf] %vm1127, %v1848
        %s1851 = scalar_lea.vmem [#allocation2], 10
        %v1852 = vld [vmem:[%s1851] ss:$16 sm:$0x3]
        %v1853 = vld [vmem:[%s1851] ss:$16 sm:$0xc]
        %v1854 = vor.u32 %v1852, %v1853
        %v1855 = vld [vmem:[%s1851] ss:$16 sm:$0x30]
        %v1856 = vor.u32 %v1854, %v1855
        %v1857 = vld [vmem:[%s1851] ss:$16 sm:$0xc0]
        %v1858 = vor.u32 %v1856, %v1857
        %s1859 = scalar_lea.vmem [#allocation2], 138
        %v1860 = vld [vmem:[%s1859] ss:$16 sm:$0x3]
        %v1861 = vld [vmem:[%s1859] ss:$16 sm:$0xc]
        %v1862 = vor.u32 %v1860, %v1861
        %v1864 = vsel %vm962, %v1862, 0
        %1866 = vmatprep.subr.mxu0 0.0
        %1867 = vmatpush1.msra.mxu0 %v1858
        %1868 = vmatprep.subr.mxu0 0.0
        %1869 = vmatpush1.msra.mxu0 %v1864
        %1870 = vmatprep.subr.mxu0 0.0
        %1871 = vmatpush1.msra.mxu0 0.0
        %1872 = vmatprep.subr.mxu0 0.0
        %1873 = vmatpush1.msra.mxu0 0.0
        %1874 = vmatprep.subr.mxu0 0.0
        %1875 = vmatpush1.msra.mxu0 0.0
        %1876 = vmatprep.subr.mxu0 0.0
        %1877 = vmatpush1.msra.mxu0 0.0
        %1878 = vmatprep.subr.mxu0 0.0
        %1879 = vmatpush1.msra.mxu0 0.0
        %1880 = vmatprep.subr.mxu0 0.0
        %1881 = vmatpush1.msra.mxu0 0.0
        %1882 = vmatprep.subr.mxu0 0.0
        %1883 = vmatpush1.msra.mxu0 0.0
        %1884 = vmatprep.subr.mxu0 0.0
        %1885 = vmatpush1.msra.mxu0 0.0
        %1886 = vmatprep.subr.mxu0 0.0
        %1887 = vmatpush1.msra.mxu0 0.0
        %1888 = vmatprep.subr.mxu0 0.0
        %1889 = vmatpush1.msra.mxu0 0.0
        %1890 = vmatprep.subr.mxu0 0.0
        %1891 = vmatpush1.msra.mxu0 0.0
        %1892 = vmatprep.subr.mxu0 0.0
        %1893 = vmatpush1.msra.mxu0 0.0
        %1894 = vmatprep.subr.mxu0 0.0
        %1895 = vmatpush1.msra.mxu0 0.0
        %1896 = vmatprep.subr.mxu0 0.0
        %1897 = vmatpush1.msra.mxu0 0.0
        %1898 = vmatprep.subr.mxu0 0.0
        %1899 = vmatpush1.msra.mxu0 0.0
        %1900 = vmatprep.subr.mxu0 0.0
        %1901 = vmatpush1.msra.mxu0 0.0
        %1902 = vmatprep.subr.mxu0 0.0
        %1903 = vmatpush1.msra.mxu0 0.0
        %1904 = vmatprep.subr.mxu0 0.0
        %1905 = vmatpush1.msra.mxu0 0.0
        %1906 = vmatprep.subr.mxu0 0.0
        %1907 = vmatpush1.msra.mxu0 0.0
        %1908 = vmatprep.subr.mxu0 0.0
        %1909 = vmatpush1.msra.mxu0 0.0
        %1910 = vmatprep.subr.mxu0 0.0
        %1911 = vmatpush1.msra.mxu0 0.0
        %1912 = vmatprep.subr.mxu0 0.0
        %1913 = vmatpush1.msra.mxu0 0.0
        %1914 = vmatprep.subr.mxu0 0.0
        %1915 = vmatpush1.msra.mxu0 0.0
        %1916 = vmatprep.subr.mxu0 0.0
        %1917 = vmatpush1.msra.mxu0 0.0
        %1918 = vmatprep.subr.mxu0 0.0
        %1919 = vmatpush1.msra.mxu0 0.0
        %1920 = vmatprep.subr.mxu0 0.0
        %1921 = vmatpush1.msra.mxu0 0.0
        %1922 = vmatprep.subr.mxu0 0.0
        %1923 = vmatpush1.msra.mxu0 0.0
        %1924 = vmatprep.subr.mxu0 0.0
        %1925 = vmatpush1.msra.mxu0 0.0
        %1926 = vmatprep.subr.mxu0 0.0
        %1927 = vmatpush1.msra.mxu0 0.0
        %1928 = vmatprep.subr.mxu0 0.0
        %1929 = vmatpush1.msra.mxu0 0.0
        %1930 = vmatprep.mubr.f32.mxu0 0.0
        %1931 = vmatmul.mubr.f32.gmra.mrb[0].mxu0 %v960
        %v1932 = vpop.f32.mrb[0].mxu0
        %v1933 = vadd.f32 %v956, %v1932
        %v1934 = vpop.f32.mrb[0].mxu0
        %1935 = vdwg.mxu0
        %1937 = vrot.lane.b32.xlu0 %v1933, 32
        %v1938 = vpop.permute.xlu0 %1937
        %1940 = vst.msk [vmem:[%s255 + $0x4] sm:$0xf] %vm1218, %v1938
        %s1941 = scalar_lea.vmem [#allocation2], 11
        %v1942 = vld [vmem:[%s1941] ss:$16 sm:$0x3]
        %v1943 = vld [vmem:[%s1941] ss:$16 sm:$0xc]
        %v1944 = vor.u32 %v1942, %v1943
        %v1945 = vld [vmem:[%s1941] ss:$16 sm:$0x30]
        %v1946 = vor.u32 %v1944, %v1945
        %v1947 = vld [vmem:[%s1941] ss:$16 sm:$0xc0]
        %v1948 = vor.u32 %v1946, %v1947
        %s1949 = scalar_lea.vmem [#allocation2], 139
        %v1950 = vld [vmem:[%s1949] ss:$16 sm:$0x3]
        %v1951 = vld [vmem:[%s1949] ss:$16 sm:$0xc]
        %v1952 = vor.u32 %v1950, %v1951
        %v1954 = vsel %vm962, %v1952, 0
        %1956 = vmatprep.subr.mxu0 0.0
        %1957 = vmatpush1.msra.mxu0 %v1948
        %1958 = vmatprep.subr.mxu0 0.0
        %1959 = vmatpush1.msra.mxu0 %v1954
        %1960 = vmatprep.subr.mxu0 0.0
        %1961 = vmatpush1.msra.mxu0 0.0
        %1962 = vmatprep.subr.mxu0 0.0
        %1963 = vmatpush1.msra.mxu0 0.0
        %1964 = vmatprep.subr.mxu0 0.0
        %1965 = vmatpush1.msra.mxu0 0.0
        %1966 = vmatprep.subr.mxu0 0.0
        %1967 = vmatpush1.msra.mxu0 0.0
        %1968 = vmatprep.subr.mxu0 0.0
        %1969 = vmatpush1.msra.mxu0 0.0
        %1970 = vmatprep.subr.mxu0 0.0
        %1971 = vmatpush1.msra.mxu0 0.0
        %1972 = vmatprep.subr.mxu0 0.0
        %1973 = vmatpush1.msra.mxu0 0.0
        %1974 = vmatprep.subr.mxu0 0.0
        %1975 = vmatpush1.msra.mxu0 0.0
        %1976 = vmatprep.subr.mxu0 0.0
        %1977 = vmatpush1.msra.mxu0 0.0
        %1978 = vmatprep.subr.mxu0 0.0
        %1979 = vmatpush1.msra.mxu0 0.0
        %1980 = vmatprep.subr.mxu0 0.0
        %1981 = vmatpush1.msra.mxu0 0.0
        %1982 = vmatprep.subr.mxu0 0.0
        %1983 = vmatpush1.msra.mxu0 0.0
        %1984 = vmatprep.subr.mxu0 0.0
        %1985 = vmatpush1.msra.mxu0 0.0
        %1986 = vmatprep.subr.mxu0 0.0
        %1987 = vmatpush1.msra.mxu0 0.0
        %1988 = vmatprep.subr.mxu0 0.0
        %1989 = vmatpush1.msra.mxu0 0.0
        %1990 = vmatprep.subr.mxu0 0.0
        %1991 = vmatpush1.msra.mxu0 0.0
        %1992 = vmatprep.subr.mxu0 0.0
        %1993 = vmatpush1.msra.mxu0 0.0
        %1994 = vmatprep.subr.mxu0 0.0
        %1995 = vmatpush1.msra.mxu0 0.0
        %1996 = vmatprep.subr.mxu0 0.0
        %1997 = vmatpush1.msra.mxu0 0.0
        %1998 = vmatprep.subr.mxu0 0.0
        %1999 = vmatpush1.msra.mxu0 0.0
        %2000 = vmatprep.subr.mxu0 0.0
        %2001 = vmatpush1.msra.mxu0 0.0
        %2002 = vmatprep.subr.mxu0 0.0
        %2003 = vmatpush1.msra.mxu0 0.0
        %2004 = vmatprep.subr.mxu0 0.0
        %2005 = vmatpush1.msra.mxu0 0.0
        %2006 = vmatprep.subr.mxu0 0.0
        %2007 = vmatpush1.msra.mxu0 0.0
        %2008 = vmatprep.subr.mxu0 0.0
        %2009 = vmatpush1.msra.mxu0 0.0
        %2010 = vmatprep.subr.mxu0 0.0
        %2011 = vmatpush1.msra.mxu0 0.0
        %2012 = vmatprep.subr.mxu0 0.0
        %2013 = vmatpush1.msra.mxu0 0.0
        %2014 = vmatprep.subr.mxu0 0.0
        %2015 = vmatpush1.msra.mxu0 0.0
        %2016 = vmatprep.subr.mxu0 0.0
        %2017 = vmatpush1.msra.mxu0 0.0
        %2018 = vmatprep.subr.mxu0 0.0
        %2019 = vmatpush1.msra.mxu0 0.0
        %2020 = vmatprep.mubr.f32.mxu0 0.0
        %2021 = vmatmul.mubr.f32.gmra.mrb[0].mxu0 %v960
        %v2022 = vpop.f32.mrb[0].mxu0
        %v2023 = vadd.f32 %v956, %v2022
        %v2024 = vpop.f32.mrb[0].mxu0
        %2025 = vdwg.mxu0
        %2027 = vrot.lane.b32.xlu0 %v2023, 48
        %v2028 = vpop.permute.xlu0 %2027
        %2030 = vst.msk [vmem:[%s255 + $0x4] sm:$0xf] %vm1309, %v2028
        %s2031 = scalar_lea.vmem [#allocation2], 12
        %v2032 = vld [vmem:[%s2031] ss:$16 sm:$0x3]
        %v2033 = vld [vmem:[%s2031] ss:$16 sm:$0xc]
        %v2034 = vor.u32 %v2032, %v2033
        %v2035 = vld [vmem:[%s2031] ss:$16 sm:$0x30]
        %v2036 = vor.u32 %v2034, %v2035
        %v2037 = vld [vmem:[%s2031] ss:$16 sm:$0xc0]
        %v2038 = vor.u32 %v2036, %v2037
        %s2039 = scalar_lea.vmem [#allocation2], 140
        %v2040 = vld [vmem:[%s2039] ss:$16 sm:$0x3]
        %v2041 = vld [vmem:[%s2039] ss:$16 sm:$0xc]
        %v2042 = vor.u32 %v2040, %v2041
        %v2044 = vsel %vm962, %v2042, 0
        %2046 = vmatprep.subr.mxu0 0.0
        %2047 = vmatpush1.msra.mxu0 %v2038
        %2048 = vmatprep.subr.mxu0 0.0
        %2049 = vmatpush1.msra.mxu0 %v2044
        %2050 = vmatprep.subr.mxu0 0.0
        %2051 = vmatpush1.msra.mxu0 0.0
        %2052 = vmatprep.subr.mxu0 0.0
        %2053 = vmatpush1.msra.mxu0 0.0
        %2054 = vmatprep.subr.mxu0 0.0
        %2055 = vmatpush1.msra.mxu0 0.0
        %2056 = vmatprep.subr.mxu0 0.0
        %2057 = vmatpush1.msra.mxu0 0.0
        %2058 = vmatprep.subr.mxu0 0.0
        %2059 = vmatpush1.msra.mxu0 0.0
        %2060 = vmatprep.subr.mxu0 0.0
        %2061 = vmatpush1.msra.mxu0 0.0
        %2062 = vmatprep.subr.mxu0 0.0
        %2063 = vmatpush1.msra.mxu0 0.0
        %2064 = vmatprep.subr.mxu0 0.0
        %2065 = vmatpush1.msra.mxu0 0.0
        %2066 = vmatprep.subr.mxu0 0.0
        %2067 = vmatpush1.msra.mxu0 0.0
        %2068 = vmatprep.subr.mxu0 0.0
        %2069 = vmatpush1.msra.mxu0 0.0
        %2070 = vmatprep.subr.mxu0 0.0
        %2071 = vmatpush1.msra.mxu0 0.0
        %2072 = vmatprep.subr.mxu0 0.0
        %2073 = vmatpush1.msra.mxu0 0.0
        %2074 = vmatprep.subr.mxu0 0.0
        %2075 = vmatpush1.msra.mxu0 0.0
        %2076 = vmatprep.subr.mxu0 0.0
        %2077 = vmatpush1.msra.mxu0 0.0
        %2078 = vmatprep.subr.mxu0 0.0
        %2079 = vmatpush1.msra.mxu0 0.0
        %2080 = vmatprep.subr.mxu0 0.0
        %2081 = vmatpush1.msra.mxu0 0.0
        %2082 = vmatprep.subr.mxu0 0.0
        %2083 = vmatpush1.msra.mxu0 0.0
        %2084 = vmatprep.subr.mxu0 0.0
        %2085 = vmatpush1.msra.mxu0 0.0
        %2086 = vmatprep.subr.mxu0 0.0
        %2087 = vmatpush1.msra.mxu0 0.0
        %2088 = vmatprep.subr.mxu0 0.0
        %2089 = vmatpush1.msra.mxu0 0.0
        %2090 = vmatprep.subr.mxu0 0.0
        %2091 = vmatpush1.msra.mxu0 0.0
        %2092 = vmatprep.subr.mxu0 0.0
        %2093 = vmatpush1.msra.mxu0 0.0
        %2094 = vmatprep.subr.mxu0 0.0
        %2095 = vmatpush1.msra.mxu0 0.0
        %2096 = vmatprep.subr.mxu0 0.0
        %2097 = vmatpush1.msra.mxu0 0.0
        %2098 = vmatprep.subr.mxu0 0.0
        %2099 = vmatpush1.msra.mxu0 0.0
        %2100 = vmatprep.subr.mxu0 0.0
        %2101 = vmatpush1.msra.mxu0 0.0
        %2102 = vmatprep.subr.mxu0 0.0
        %2103 = vmatpush1.msra.mxu0 0.0
        %2104 = vmatprep.subr.mxu0 0.0
        %2105 = vmatpush1.msra.mxu0 0.0
        %2106 = vmatprep.subr.mxu0 0.0
        %2107 = vmatpush1.msra.mxu0 0.0
        %2108 = vmatprep.subr.mxu0 0.0
        %2109 = vmatpush1.msra.mxu0 0.0
        %2110 = vmatprep.mubr.f32.mxu0 0.0
        %2111 = vmatmul.mubr.f32.gmra.mrb[0].mxu0 %v960
        %v2112 = vpop.f32.mrb[0].mxu0
        %v2113 = vadd.f32 %v956, %v2112
        %v2114 = vpop.f32.mrb[0].mxu0
        %2115 = vdwg.mxu0
        %2117 = vrot.lane.b32.xlu0 %v2113, 64
        %v2118 = vpop.permute.xlu0 %2117
        %2120 = vst.msk [vmem:[%s255 + $0x4] sm:$0xf] %vm1400, %v2118
        %s2121 = scalar_lea.vmem [#allocation2], 13
        %v2122 = vld [vmem:[%s2121] ss:$16 sm:$0x3]
        %v2123 = vld [vmem:[%s2121] ss:$16 sm:$0xc]
        %v2124 = vor.u32 %v2122, %v2123
        %v2125 = vld [vmem:[%s2121] ss:$16 sm:$0x30]
        %v2126 = vor.u32 %v2124, %v2125
        %v2127 = vld [vmem:[%s2121] ss:$16 sm:$0xc0]
        %v2128 = vor.u32 %v2126, %v2127
        %s2129 = scalar_lea.vmem [#allocation2], 141
        %v2130 = vld [vmem:[%s2129] ss:$16 sm:$0x3]
        %v2131 = vld [vmem:[%s2129] ss:$16 sm:$0xc]
        %v2132 = vor.u32 %v2130, %v2131
        %v2134 = vsel %vm962, %v2132, 0
        %2136 = vmatprep.subr.mxu0 0.0
        %2137 = vmatpush1.msra.mxu0 %v2128
        %2138 = vmatprep.subr.mxu0 0.0
        %2139 = vmatpush1.msra.mxu0 %v2134
        %2140 = vmatprep.subr.mxu0 0.0
        %2141 = vmatpush1.msra.mxu0 0.0
        %2142 = vmatprep.subr.mxu0 0.0
        %2143 = vmatpush1.msra.mxu0 0.0
        %2144 = vmatprep.subr.mxu0 0.0
        %2145 = vmatpush1.msra.mxu0 0.0
        %2146 = vmatprep.subr.mxu0 0.0
        %2147 = vmatpush1.msra.mxu0 0.0
        %2148 = vmatprep.subr.mxu0 0.0
        %2149 = vmatpush1.msra.mxu0 0.0
        %2150 = vmatprep.subr.mxu0 0.0
        %2151 = vmatpush1.msra.mxu0 0.0
        %2152 = vmatprep.subr.mxu0 0.0
        %2153 = vmatpush1.msra.mxu0 0.0
        %2154 = vmatprep.subr.mxu0 0.0
        %2155 = vmatpush1.msra.mxu0 0.0
        %2156 = vmatprep.subr.mxu0 0.0
        %2157 = vmatpush1.msra.mxu0 0.0
        %2158 = vmatprep.subr.mxu0 0.0
        %2159 = vmatpush1.msra.mxu0 0.0
        %2160 = vmatprep.subr.mxu0 0.0
        %2161 = vmatpush1.msra.mxu0 0.0
        %2162 = vmatprep.subr.mxu0 0.0
        %2163 = vmatpush1.msra.mxu0 0.0
        %2164 = vmatprep.subr.mxu0 0.0
        %2165 = vmatpush1.msra.mxu0 0.0
        %2166 = vmatprep.subr.mxu0 0.0
        %2167 = vmatpush1.msra.mxu0 0.0
        %2168 = vmatprep.subr.mxu0 0.0
        %2169 = vmatpush1.msra.mxu0 0.0
        %2170 = vmatprep.subr.mxu0 0.0
        %2171 = vmatpush1.msra.mxu0 0.0
        %2172 = vmatprep.subr.mxu0 0.0
        %2173 = vmatpush1.msra.mxu0 0.0
        %2174 = vmatprep.subr.mxu0 0.0
        %2175 = vmatpush1.msra.mxu0 0.0
        %2176 = vmatprep.subr.mxu0 0.0
        %2177 = vmatpush1.msra.mxu0 0.0
        %2178 = vmatprep.subr.mxu0 0.0
        %2179 = vmatpush1.msra.mxu0 0.0
        %2180 = vmatprep.subr.mxu0 0.0
        %2181 = vmatpush1.msra.mxu0 0.0
        %2182 = vmatprep.subr.mxu0 0.0
        %2183 = vmatpush1.msra.mxu0 0.0
        %2184 = vmatprep.subr.mxu0 0.0
        %2185 = vmatpush1.msra.mxu0 0.0
        %2186 = vmatprep.subr.mxu0 0.0
        %2187 = vmatpush1.msra.mxu0 0.0
        %2188 = vmatprep.subr.mxu0 0.0
        %2189 = vmatpush1.msra.mxu0 0.0
        %2190 = vmatprep.subr.mxu0 0.0
        %2191 = vmatpush1.msra.mxu0 0.0
        %2192 = vmatprep.subr.mxu0 0.0
        %2193 = vmatpush1.msra.mxu0 0.0
        %2194 = vmatprep.subr.mxu0 0.0
        %2195 = vmatpush1.msra.mxu0 0.0
        %2196 = vmatprep.subr.mxu0 0.0
        %2197 = vmatpush1.msra.mxu0 0.0
        %2198 = vmatprep.subr.mxu0 0.0
        %2199 = vmatpush1.msra.mxu0 0.0
        %2200 = vmatprep.mubr.f32.mxu0 0.0
        %2201 = vmatmul.mubr.f32.gmra.mrb[0].mxu0 %v960
        %v2202 = vpop.f32.mrb[0].mxu0
        %v2203 = vadd.f32 %v956, %v2202
        %v2204 = vpop.f32.mrb[0].mxu0
        %2205 = vdwg.mxu0
        %2207 = vrot.lane.b32.xlu0 %v2203, 80
        %v2208 = vpop.permute.xlu0 %2207
        %2210 = vst.msk [vmem:[%s255 + $0x4] sm:$0xf] %vm1491, %v2208
        %s2211 = scalar_lea.vmem [#allocation2], 14
        %v2212 = vld [vmem:[%s2211] ss:$16 sm:$0x3]
        %v2213 = vld [vmem:[%s2211] ss:$16 sm:$0xc]
        %v2214 = vor.u32 %v2212, %v2213
        %v2215 = vld [vmem:[%s2211] ss:$16 sm:$0x30]
        %v2216 = vor.u32 %v2214, %v2215
        %v2217 = vld [vmem:[%s2211] ss:$16 sm:$0xc0]
        %v2218 = vor.u32 %v2216, %v2217
        %s2219 = scalar_lea.vmem [#allocation2], 142
        %v2220 = vld [vmem:[%s2219] ss:$16 sm:$0x3]
        %v2221 = vld [vmem:[%s2219] ss:$16 sm:$0xc]
        %v2222 = vor.u32 %v2220, %v2221
        %v2224 = vsel %vm962, %v2222, 0
        %2226 = vmatprep.subr.mxu0 0.0
        %2227 = vmatpush1.msra.mxu0 %v2218
        %2228 = vmatprep.subr.mxu0 0.0
        %2229 = vmatpush1.msra.mxu0 %v2224
        %2230 = vmatprep.subr.mxu0 0.0
        %2231 = vmatpush1.msra.mxu0 0.0
        %2232 = vmatprep.subr.mxu0 0.0
        %2233 = vmatpush1.msra.mxu0 0.0
        %2234 = vmatprep.subr.mxu0 0.0
        %2235 = vmatpush1.msra.mxu0 0.0
        %2236 = vmatprep.subr.mxu0 0.0
        %2237 = vmatpush1.msra.mxu0 0.0
        %2238 = vmatprep.subr.mxu0 0.0
        %2239 = vmatpush1.msra.mxu0 0.0
        %2240 = vmatprep.subr.mxu0 0.0
        %2241 = vmatpush1.msra.mxu0 0.0
        %2242 = vmatprep.subr.mxu0 0.0
        %2243 = vmatpush1.msra.mxu0 0.0
        %2244 = vmatprep.subr.mxu0 0.0
        %2245 = vmatpush1.msra.mxu0 0.0
        %2246 = vmatprep.subr.mxu0 0.0
        %2247 = vmatpush1.msra.mxu0 0.0
        %2248 = vmatprep.subr.mxu0 0.0
        %2249 = vmatpush1.msra.mxu0 0.0
        %2250 = vmatprep.subr.mxu0 0.0
        %2251 = vmatpush1.msra.mxu0 0.0
        %2252 = vmatprep.subr.mxu0 0.0
        %2253 = vmatpush1.msra.mxu0 0.0
        %2254 = vmatprep.subr.mxu0 0.0
        %2255 = vmatpush1.msra.mxu0 0.0
        %2256 = vmatprep.subr.mxu0 0.0
        %2257 = vmatpush1.msra.mxu0 0.0
        %2258 = vmatprep.subr.mxu0 0.0
        %2259 = vmatpush1.msra.mxu0 0.0
        %2260 = vmatprep.subr.mxu0 0.0
        %2261 = vmatpush1.msra.mxu0 0.0
        %2262 = vmatprep.subr.mxu0 0.0
        %2263 = vmatpush1.msra.mxu0 0.0
        %2264 = vmatprep.subr.mxu0 0.0
        %2265 = vmatpush1.msra.mxu0 0.0
        %2266 = vmatprep.subr.mxu0 0.0
        %2267 = vmatpush1.msra.mxu0 0.0
        %2268 = vmatprep.subr.mxu0 0.0
        %2269 = vmatpush1.msra.mxu0 0.0
        %2270 = vmatprep.subr.mxu0 0.0
        %2271 = vmatpush1.msra.mxu0 0.0
        %2272 = vmatprep.subr.mxu0 0.0
        %2273 = vmatpush1.msra.mxu0 0.0
        %2274 = vmatprep.subr.mxu0 0.0
        %2275 = vmatpush1.msra.mxu0 0.0
        %2276 = vmatprep.subr.mxu0 0.0
        %2277 = vmatpush1.msra.mxu0 0.0
        %2278 = vmatprep.subr.mxu0 0.0
        %2279 = vmatpush1.msra.mxu0 0.0
        %2280 = vmatprep.subr.mxu0 0.0
        %2281 = vmatpush1.msra.mxu0 0.0
        %2282 = vmatprep.subr.mxu0 0.0
        %2283 = vmatpush1.msra.mxu0 0.0
        %2284 = vmatprep.subr.mxu0 0.0
        %2285 = vmatpush1.msra.mxu0 0.0
        %2286 = vmatprep.subr.mxu0 0.0
        %2287 = vmatpush1.msra.mxu0 0.0
        %2288 = vmatprep.subr.mxu0 0.0
        %2289 = vmatpush1.msra.mxu0 0.0
        %2290 = vmatprep.mubr.f32.mxu0 0.0
        %2291 = vmatmul.mubr.f32.gmra.mrb[0].mxu0 %v960
        %v2292 = vpop.f32.mrb[0].mxu0
        %v2293 = vadd.f32 %v956, %v2292
        %v2294 = vpop.f32.mrb[0].mxu0
        %2295 = vdwg.mxu0
        %2297 = vrot.lane.b32.xlu0 %v2293, 96
        %v2298 = vpop.permute.xlu0 %2297
        %2300 = vst.msk [vmem:[%s255 + $0x4] sm:$0xf] %vm1582, %v2298
        %s2301 = scalar_lea.vmem [#allocation2], 15
        %v2302 = vld [vmem:[%s2301] ss:$16 sm:$0x3]
        %v2303 = vld [vmem:[%s2301] ss:$16 sm:$0xc]
        %v2304 = vor.u32 %v2302, %v2303
        %v2305 = vld [vmem:[%s2301] ss:$16 sm:$0x30]
        %v2306 = vor.u32 %v2304, %v2305
        %v2307 = vld [vmem:[%s2301] ss:$16 sm:$0xc0]
        %v2308 = vor.u32 %v2306, %v2307
        %s2309 = scalar_lea.vmem [#allocation2], 143
        %v2310 = vld [vmem:[%s2309] ss:$16 sm:$0x3]
        %v2311 = vld [vmem:[%s2309] ss:$16 sm:$0xc]
        %v2312 = vor.u32 %v2310, %v2311
        %v2314 = vsel %vm962, %v2312, 0
        %2316 = vmatprep.subr.mxu0 0.0
        %2317 = vmatpush1.msra.mxu0 %v2308
        %2318 = vmatprep.subr.mxu0 0.0
        %2319 = vmatpush1.msra.mxu0 %v2314
        %2320 = vmatprep.subr.mxu0 0.0
        %2321 = vmatpush1.msra.mxu0 0.0
        %2322 = vmatprep.subr.mxu0 0.0
        %2323 = vmatpush1.msra.mxu0 0.0
        %2324 = vmatprep.subr.mxu0 0.0
        %2325 = vmatpush1.msra.mxu0 0.0
        %2326 = vmatprep.subr.mxu0 0.0
        %2327 = vmatpush1.msra.mxu0 0.0
        %2328 = vmatprep.subr.mxu0 0.0
        %2329 = vmatpush1.msra.mxu0 0.0
        %2330 = vmatprep.subr.mxu0 0.0
        %2331 = vmatpush1.msra.mxu0 0.0
        %2332 = vmatprep.subr.mxu0 0.0
        %2333 = vmatpush1.msra.mxu0 0.0
        %2334 = vmatprep.subr.mxu0 0.0
        %2335 = vmatpush1.msra.mxu0 0.0
        %2336 = vmatprep.subr.mxu0 0.0
        %2337 = vmatpush1.msra.mxu0 0.0
        %2338 = vmatprep.subr.mxu0 0.0
        %2339 = vmatpush1.msra.mxu0 0.0
        %2340 = vmatprep.subr.mxu0 0.0
        %2341 = vmatpush1.msra.mxu0 0.0
        %2342 = vmatprep.subr.mxu0 0.0
        %2343 = vmatpush1.msra.mxu0 0.0
        %2344 = vmatprep.subr.mxu0 0.0
        %2345 = vmatpush1.msra.mxu0 0.0
        %2346 = vmatprep.subr.mxu0 0.0
        %2347 = vmatpush1.msra.mxu0 0.0
        %2348 = vmatprep.subr.mxu0 0.0
        %2349 = vmatpush1.msra.mxu0 0.0
        %2350 = vmatprep.subr.mxu0 0.0
        %2351 = vmatpush1.msra.mxu0 0.0
        %2352 = vmatprep.subr.mxu0 0.0
        %2353 = vmatpush1.msra.mxu0 0.0
        %2354 = vmatprep.subr.mxu0 0.0
        %2355 = vmatpush1.msra.mxu0 0.0
        %2356 = vmatprep.subr.mxu0 0.0
        %2357 = vmatpush1.msra.mxu0 0.0
        %2358 = vmatprep.subr.mxu0 0.0
        %2359 = vmatpush1.msra.mxu0 0.0
        %2360 = vmatprep.subr.mxu0 0.0
        %2361 = vmatpush1.msra.mxu0 0.0
        %2362 = vmatprep.subr.mxu0 0.0
        %2363 = vmatpush1.msra.mxu0 0.0
        %2364 = vmatprep.subr.mxu0 0.0
        %2365 = vmatpush1.msra.mxu0 0.0
        %2366 = vmatprep.subr.mxu0 0.0
        %2367 = vmatpush1.msra.mxu0 0.0
        %2368 = vmatprep.subr.mxu0 0.0
        %2369 = vmatpush1.msra.mxu0 0.0
        %2370 = vmatprep.subr.mxu0 0.0
        %2371 = vmatpush1.msra.mxu0 0.0
        %2372 = vmatprep.subr.mxu0 0.0
        %2373 = vmatpush1.msra.mxu0 0.0
        %2374 = vmatprep.subr.mxu0 0.0
        %2375 = vmatpush1.msra.mxu0 0.0
        %2376 = vmatprep.subr.mxu0 0.0
        %2377 = vmatpush1.msra.mxu0 0.0
        %2378 = vmatprep.subr.mxu0 0.0
        %2379 = vmatpush1.msra.mxu0 0.0
        %2380 = vmatprep.mubr.f32.mxu0 0.0
        %2381 = vmatmul.mubr.f32.gmra.mrb[0].mxu0 %v960
        %v2382 = vpop.f32.mrb[0].mxu0
        %v2383 = vadd.f32 %v956, %v2382
        %v2384 = vpop.f32.mrb[0].mxu0
        %2385 = vdwg.mxu0
        %2387 = vrot.lane.b32.xlu0 %v2383, 112
        %v2388 = vpop.permute.xlu0 %2387
        %2390 = vst.msk [vmem:[%s255 + $0x4] sm:$0xf] %vm1673, %v2388
        %s2391 = sand.u32 %s120, 1
        %s2392 = scalar_lea.sflag [#allocation5], %s2391
        %s2393 = sand.u32 %s120, 1
        %s2394 = smul.addr %s2393, 8
        %s2395 = scalar_lea.vmem [#allocation11], %s2394
        // Predicated region
        $region53: #{tpu_custom_call.1} parent=35 // pred_check
          %p2396 = pneg %p130
        $region54: #{tpu_custom_call.1} parent=35 // pred_check_branch
          %2398 = sbr.rel (%p2396) target = $region56
        $region55: #{tpu_custom_call.1} parent=35 // pred_region
          %s2400 = ssub.s32 128, 128
          %2401 = vsyncadd %s2392, %s2400
          %s2402 = smul.addr %s23, 2
          %s2403 = smul.addr %s2402, 64
          %s2404 = scalar_lea.hbm %s4, %s2403
          %s2406 = sshll.u32 %s2395, 4
          %s2407 = int_to_ptr.vmem [resolvable:$true] %s2406
          %2409 = dma.vmem_to_hbm [thread:$0]  %s2407, 128, %s2404, %s2392
        $region56: #{tpu_custom_call.1} parent=35 // pred_fallthru
          _
      $region36: #{tpu_custom_call.1} parent=5 // pred_fallthru
        _
      %p2410 = scmp.le.s32.totalorder 2, %s18
      // Predicated region
      $region57: #{tpu_custom_call.1} parent=5 // pred_check
        %p2411 = pneg %p2410
      $region58: #{tpu_custom_call.1} parent=5 // pred_check_branch
        %2413 = sbr.rel (%p2411) target = $region60
      $region59: #{tpu_custom_call.1} parent=5 // pred_region
        %s2414 = ssub.s32 %s18, 2
        // Predicated region
        $region61: #{tpu_custom_call.1} parent=59 // pred_check
          %p2415 = pneg %p136
        $region62: #{tpu_custom_call.1} parent=59 // pred_check_branch
          %2417 = sbr.rel (%p2415) target = $region64
        $region63: #{tpu_custom_call.1} parent=59 // pred_region
          %s2418 = sand.u32 %s121, 1
          %s2419 = scalar_lea.sflag [#allocation5], %s2418
          %s2420 = sand.u32 %s121, 1
          %s2421 = smul.addr %s2420, 8
          %s2422 = scalar_lea.vmem [#allocation11], %s2421
          %2423 = dma.done %s2419, 128
        $region64: #{tpu_custom_call.1} parent=59 // pred_fallthru
          _
      $region60: #{tpu_custom_call.1} parent=5 // pred_fallthru
        _
    $region6: #{tpu_custom_call.1} parent=1 // loop_footer
      %s22 = sadd.s32 1, %s18
    $region7: #{tpu_custom_call.1} parent=1 // loop_footer_branch
      %17 = sbr.rel target = $region3
    $region8: #{tpu_custom_call.1} parent=1 // loop_exit
      _
    %2424 = vsyncpa [#allocation4], 1
    %s2425 = scalar_lea.sflag [#allocation4], 1
    %2426 = vsyncpa %s2425, 1
    %2427 = vsyncpa [#allocation7], 1
    %2428 = vsyncpa [#allocation10], 1
    %2429 = vsyncpa [#allocation5], 1
    %s2430 = scalar_lea.sflag [#allocation5], 1
    %2431 = vsyncpa %s2430, 1

</llo_original>
